<compile_context>
chip_gen: v5e
topology: v5e:2x2
jax: 0.10.0
libtpu: 0.0.40
codegen_flags: <defaults>
</compile_context>

<pallas_src>
import functools

import jax
import jax.numpy as jnp
import numpy as np
from jax import lax
from jax.experimental import pallas as pl
from jax.experimental.pallas import tpu as pltpu


def _mcb_kernel(x_ref, m_ref, wc_ref, bc_ref, sa_ref, sb_ref, g_ref, o_ref,
                xpad_ref, xim_ref, *, H, W, Cin, Cout, Bb, PAD):
    # x_ref  : (Bb, Cin, HW)             f32   unpadded input block
    # m_ref  : (2, HW)                   bf16  column masks [dw=-1 valid, dw=+1 valid]
    # wc_ref : (2*Cout, 9*Cin)           bf16  fused [1x1 ; 3x3] conv weight
    # bc_ref : (2*Cout, 1)               f32   fused conv bias
    # sa_ref : (2*Cout, 2*Cr)            f32   block-diag SE fc1 (transposed)
    # sb_ref : (2*Cout, 2*Cr)            f32   block-diag SE fc2
    # g_ref  : (3,) f32 in SMEM          gammas
    # o_ref  : (Bb, Cout, HW)            f32
    # xpad_ref: VMEM (Cin, HW + 2*PAD)   bf16  scratch: zero-padded pixel axis
    # xim_ref : VMEM (9*Cin, HW)         bf16  scratch: im2col slab
    HW = H * W

    # Zero the pad strips (row out-of-range taps read these zeros).  Cheap
    # (2 * Cin * PAD elements) and done unconditionally every step so the
    # kernel stays correct when the grid axis is sharded across TensorCores.
    zeros_pad = jnp.zeros((Cin, PAD), jnp.bfloat16)
    xpad_ref[:, pl.ds(0, PAD)] = zeros_pad
    xpad_ref[:, pl.ds(HW + PAD, PAD)] = zeros_pad

    # Hoisted mask broadcasts: one sublane-broadcast per dw group, reused by
    # all 3 taps of that group and all Bb images.
    mL = jnp.broadcast_to(m_ref[0:1, :], (Cin, HW))   # valid iff c-1 >= 0
    mR = jnp.broadcast_to(m_ref[1:2, :], (Cin, HW))   # valid iff c+1 <  W

    for i in range(Bb):
        # In-kernel f32 -> bf16 cast; PAD is a multiple of 128 so this store
        # is lane-aligned (unmasked vst).
        xpad_ref[:, pl.ds(PAD, HW)] = x_ref[i].astype(jnp.bfloat16)

        # Build the (9*Cin, HW) im2col slab, one tap live at a time.  dw==0
        # taps need no mask (the pad supplies the row-boundary zeros).
        t = 0
        for dh in (-1, 0, 1):
            for dw in (-1, 0, 1):
                tap = xpad_ref[:, pl.ds(PAD + dh * W + dw, HW)]
                if dw == -1:
                    tap = tap * mL
                elif dw == 1:
                    tap = tap * mR
                xim_ref[pl.ds(t * Cin, Cin), :] = tap
                t += 1

        # Fused 1x1 + 3x3 conv: one MXU pass -> [y1 ; y2] stacked on sublanes.
        # NOTE: M = 2*Cout and K = 9*Cin only partially fill the MXU at small
        # channel counts; fine while HBM-bound, restructure (split the 1x1 out
        # / pad K to 256 multiples) if channel counts grow >= 128.
        y = jnp.dot(wc_ref[...], xim_ref[...],
                    preferred_element_type=jnp.float32) + bc_ref[...]   # (2*Cout, HW)

        # SE for both branches at once (block-diagonal weights), VPU/XLU only.
        pooled = jnp.mean(y, axis=1, keepdims=True)                         # (2*Cout, 1)
        h = jnp.maximum(
            jnp.sum(sa_ref[...] * pooled, axis=0, keepdims=True), 0.0)      # (1, 2*Cr)
        sc = jax.nn.sigmoid(
            jnp.sum(sb_ref[...] * h, axis=1, keepdims=True))                # (2*Cout, 1)

        # Epilogue: gammas folded into the tiny per-channel scale vectors;
        # residual taken from the original f32 input (full precision).
        g1 = g_ref[0]
        g2 = g_ref[1]
        g3 = g_ref[2]
        o_ref[i] = (y[:Cout] * (g1 * sc[:Cout])
                    + y[Cout:] * (g2 * sc[Cout:])
                    + g3 * x_ref[i])


def multi_conv_block(x_nchw, params, *, batch_block=None):
    """x_nchw: (B, Cin, H, W) float32.  Requires Cin == Cout (residual add)."""
    (w1, b1, w2, b2, se1_w1, se1_w2, se2_w1, se2_w2, gammas) = params
    B, Cin, H, W = x_nchw.shape
    Cout = w1.shape[0]
    Cr = se1_w1.shape[0]
    HW = H * W
    # Pad width rounded up to 128: needs >= W+1 zeros on each side for the
    # row-boundary taps, and alignment keeps the in-kernel image store unmasked.
    PAD = ((W + 1 + 127) // 128) * 128
    HWP = HW + 2 * PAD

    # --- VMEM budget (leave headroom for double buffering) -------------------
    try:
        vmem_cap = pltpu.get_tpu_info().vmem_capacity_bytes
    except Exception:
        vmem_cap = 64 << 20
    vmem_limit = min(int(vmem_cap * 3 // 4), 100 << 20)

    # --- batch packing: amortize per-step overhead on small images, but keep
    # >= 2 grid steps when B >= 2 so a v7x megacore's second TC has work; cap
    # by the VMEM working set. ------------------------------------------------
    if batch_block is None:
        target = max(1, B // 2)
        batch_block = max(d for d in range(1, target + 1) if B % d == 0)
    per_image_block_bytes = 2 * (Cin + Cout) * HW * 4          # dbl-buffered in/out
    scratch_bytes = (Cin * HWP + 9 * Cin * HW) * 2
    max_bb = max(1, (vmem_limit // 2 - scratch_bytes) // max(per_image_block_bytes, 1))
    Bb = max(1, min(batch_block, max_bb, B))
    while B % Bb:
        Bb -= 1

    # --- layout: (B, Cin, HW) channels-on-sublane / pixels-on-lane.  No HBM
    # pad/cast pass; x stays f32 and is cast in-kernel. -----------------------
    x_flat = x_nchw.reshape(B, Cin, HW)

    # --- column-validity masks for the dw=+-1 taps only (the in-kernel zero
    # pad already handles row out-of-range reads) -----------------------------
    c = np.arange(HW) % W
    masks_np = np.stack([(c >= 1), (c + 1 < W)]).astype(np.float32)   # (2, HW)
    masks = jnp.asarray(masks_np, jnp.bfloat16)

    # --- fused conv weight: (2*Cout, 9*Cin), column block t = tap (kh*3+kw) ---
    w2_flat = jnp.transpose(w2, (0, 2, 3, 1)).reshape(Cout, 9 * Cin)  # [o, t*Cin+ci]
    w1_full = jnp.zeros((Cout, 9 * Cin), jnp.float32)
    w1_full = w1_full.at[:, 4 * Cin:5 * Cin].set(w1[:, :, 0, 0])      # center tap
    wc = jnp.concatenate([w1_full, w2_flat], axis=0).astype(jnp.bfloat16)
    bc = jnp.concatenate([b1, b2]).reshape(2 * Cout, 1).astype(jnp.float32)

    # --- block-diagonal SE weights, laid out for broadcast-multiply + reduce -
    saT = jnp.zeros((2 * Cout, 2 * Cr), jnp.float32)
    saT = saT.at[:Cout, :Cr].set(se1_w1.T).at[Cout:, Cr:].set(se2_w1.T)
    sbB = jnp.zeros((2 * Cout, 2 * Cr), jnp.float32)
    sbB = sbB.at[:Cout, :Cr].set(se1_w2).at[Cout:, Cr:].set(se2_w2)

    gammas_f32 = gammas.astype(jnp.float32)

    flops = 2 * B * (2 * Cout) * (9 * Cin) * HW
    bytes_accessed = (x_flat.size * 4 + masks.size * 2 + wc.size * 2
                      + bc.size * 4 + saT.size * 4 + sbB.size * 4
                      + B * Cout * HW * 4)

    grid_spec = pltpu.PrefetchScalarGridSpec(
        num_scalar_prefetch=0,
        grid=(B // Bb,),
        in_specs=[
            pl.BlockSpec((Bb, Cin, HW), lambda b: (b, 0, 0)),
            pl.BlockSpec((2, HW), lambda b: (0, 0)),
            pl.BlockSpec((2 * Cout, 9 * Cin), lambda b: (0, 0)),
            pl.BlockSpec((2 * Cout, 1), lambda b: (0, 0)),
            pl.BlockSpec((2 * Cout, 2 * Cr), lambda b: (0, 0)),
            pl.BlockSpec((2 * Cout, 2 * Cr), lambda b: (0, 0)),
            pl.BlockSpec(memory_space=pltpu.MemorySpace.SMEM),
        ],
        out_specs=pl.BlockSpec((Bb, Cout, HW), lambda b: (b, 0, 0)),
        scratch_shapes=[
            pltpu.VMEM((Cin, HWP), jnp.bfloat16),       # padded-x scratch
            pltpu.VMEM((9 * Cin, HW), jnp.bfloat16),    # im2col slab
        ],
    )

    # NOTE: output stays f32 to match the PyTorch module; switch out_shape /
    # final cast to bf16 if the consumer tolerates it (halves output HBM).
    out_flat = pl.pallas_call(
        functools.partial(_mcb_kernel, H=H, W=W, Cin=Cin, Cout=Cout, Bb=Bb, PAD=PAD),
        out_shape=jax.ShapeDtypeStruct((B, Cout, HW), jnp.float32),
        grid_spec=grid_spec,
        compiler_params=pltpu.CompilerParams(
            dimension_semantics=("parallel",),
            vmem_limit_bytes=vmem_limit),
        cost_estimate=pl.CostEstimate(
            flops=flops, transcendentals=2 * B * Cout,
            bytes_accessed=bytes_accessed),
    )(x_flat, masks, wc, bc, saT, sbB, gammas_f32)

    return out_flat.reshape(B, Cout, H, W)            # already NCHW (free reshape)


def reference(x_nchw, params):
    """Pure-JAX f32 reference mirroring the PyTorch forward exactly."""
    (w1, b1, w2, b2, se1_w1, se1_w2, se2_w1, se2_w2, gammas) = params
    dn = ("NCHW", "OIHW", "NCHW")
    y1 = lax.conv_general_dilated(x_nchw, w1, (1, 1), "VALID",
                                  dimension_numbers=dn) + b1[None, :, None, None]
    y2 = lax.conv_general_dilated(x_nchw, w2, (1, 1), "SAME",
                                  dimension_numbers=dn) + b2[None, :, None, None]

    def se(y, wa, wb):
        p = y.mean(axis=(2, 3))                                   # (B, C)
        s = jax.nn.sigmoid(jnp.maximum(p @ wa.T, 0.0) @ wb.T)     # (B, C)
        return y * s[:, :, None, None]

    g1, g2, g3 = gammas[0], gammas[1], gammas[2]
    return g1 * se(y1, se1_w1, se1_w2) + g2 * se(y2, se2_w1, se2_w2) + g3 * x_nchw


def make_params(key, in_channels, out_channels, reduction=16):
    cr = max(out_channels // reduction, 1)
    ks = jax.random.split(key, 8)
    # kaiming_normal (fan_in) for conv weights, as in the PyTorch module
    w1 = jax.random.normal(ks[0], (out_channels, in_channels, 1, 1),
                           jnp.float32) * np.sqrt(2.0 / in_channels)
    w2 = jax.random.normal(ks[1], (out_channels, in_channels, 3, 3),
                           jnp.float32) * np.sqrt(2.0 / (9 * in_channels))
    b1 = jax.random.uniform(ks[2], (out_channels,), jnp.float32, -0.1, 0.1)
    b2 = jax.random.uniform(ks[3], (out_channels,), jnp.float32, -0.1, 0.1)
    # SE linear weights in nn.Linear (out, in) convention, no bias
    se1_w1 = jax.random.normal(ks[4], (cr, out_channels), jnp.float32) * 0.3
    se1_w2 = jax.random.normal(ks[5], (out_channels, cr), jnp.float32) * 0.3
    se2_w1 = jax.random.normal(ks[6], (cr, out_channels), jnp.float32) * 0.3
    se2_w2 = jax.random.normal(ks[7], (out_channels, cr), jnp.float32) * 0.3
    gammas = jnp.ones((3,), jnp.float32)                  # gamma1 = gamma2 = gamma3 = 1
    return (w1, b1, w2, b2, se1_w1, se1_w2, se2_w1, se2_w2, gammas)


if __name__ == "__main__":
    B, C, H, W = 2, 32, 16, 16   # in_channels == out_channels (residual requires it)
    key = jax.random.PRNGKey(0)
    kx, kp = jax.random.split(key)
    x = jax.random.normal(kx, (B, C, H, W), jnp.float32)
    params = make_params(kp, C, C, reduction=16)

    out = jax.jit(multi_conv_block)(x, params)
    out = jax.block_until_ready(out)

    ref = jax.block_until_ready(reference(x, params))
    # bf16 matmul inputs (f32 accumulation) -> slightly looser tolerance than pure f32
    np.testing.assert_allclose(np.asarray(out), np.asarray(ref), rtol=3e-2, atol=3e-2)

    print("KERNEL_OK")
</pallas_src>

<mosaic_0001>
module attributes {stable_mosaic.version = 11 : i64} {
  func.func @_mcb_kernel(%arg0: i32, %arg1: memref<1x32x256xf32, #tpu.memory_space<vmem>>, %arg2: memref<2x256xbf16, #tpu.memory_space<vmem>>, %arg3: memref<64x288xbf16, #tpu.memory_space<vmem>>, %arg4: memref<64x1xf32, #tpu.memory_space<vmem>>, %arg5: memref<64x4xf32, #tpu.memory_space<vmem>>, %arg6: memref<64x4xf32, #tpu.memory_space<vmem>>, %arg7: memref<3xf32, #tpu.memory_space<smem>>, %arg8: memref<1x32x256xf32, #tpu.memory_space<vmem>>, %arg9: memref<32x512xbf16, #tpu.memory_space<vmem>>, %arg10: memref<288x256xbf16, #tpu.memory_space<vmem>>) attributes {dimension_semantics = [#tpu.dimension_semantics<parallel>], iteration_bounds = array<i64: 2>, scalar_prefetch = 0 : i64, scratch_operands = 2 : i64, tpu.core_type = #tpu.core_type<tc>, window_params = [{transform_indices = @transform_0, window_bounds = array<i64: 1, 32, 256>}, {pipeline_mode = #tpu.pipeline_mode<synchronous>, transform_indices = @transform_1, window_bounds = array<i64: 2, 256>}, {pipeline_mode = #tpu.pipeline_mode<synchronous>, transform_indices = @transform_2, window_bounds = array<i64: 64, 288>}, {pipeline_mode = #tpu.pipeline_mode<synchronous>, transform_indices = @transform_3, window_bounds = array<i64: 64, 1>}, {pipeline_mode = #tpu.pipeline_mode<synchronous>, transform_indices = @transform_4, window_bounds = array<i64: 64, 4>}, {pipeline_mode = #tpu.pipeline_mode<synchronous>, transform_indices = @transform_5, window_bounds = array<i64: 64, 4>}, {transform_indices = @transform_6, window_bounds = array<i64: 3>}, {transform_indices = @transform_7, window_bounds = array<i64: 1, 32, 256>}]} {
    %cst = arith.constant 0.000000e+00 : bf16
    %0 = vector.broadcast %cst : bf16 to vector<32x128xbf16>
    %c0 = arith.constant 0 : index
    %c0_0 = arith.constant 0 : index
    %1 = vector.load %arg9[%c0, %c0_0] : memref<32x512xbf16, #tpu.memory_space<vmem>>, vector<32x128xbf16>
    tpu.vector_store %arg9[%c0, %c0_0], %0 {strides = array<i32>} : memref<32x512xbf16, #tpu.memory_space<vmem>>, vector<32x128xbf16>,
    %c0_1 = arith.constant 0 : index
    %c384 = arith.constant 384 : index
    %2 = vector.load %arg9[%c0_1, %c384] : memref<32x512xbf16, #tpu.memory_space<vmem>>, vector<32x128xbf16>
    tpu.vector_store %arg9[%c0_1, %c384], %0 {strides = array<i32>} : memref<32x512xbf16, #tpu.memory_space<vmem>>, vector<32x128xbf16>,
    %c0_2 = arith.constant 0 : index
    %c0_3 = arith.constant 0 : index
    %3 = vector.load %arg2[%c0_2, %c0_3] : memref<2x256xbf16, #tpu.memory_space<vmem>>, vector<1x256xbf16>
    %4 = vector.shape_cast %3 : vector<1x256xbf16> to vector<1x256xbf16>
    %5 = vector.broadcast %4 : vector<1x256xbf16> to vector<32x256xbf16>
    %c1 = arith.constant 1 : index
    %c0_4 = arith.constant 0 : index
    %6 = vector.load %arg2[%c1, %c0_4] : memref<2x256xbf16, #tpu.memory_space<vmem>>, vector<1x256xbf16>
    %7 = vector.shape_cast %6 : vector<1x256xbf16> to vector<1x256xbf16>
    %8 = vector.broadcast %7 : vector<1x256xbf16> to vector<32x256xbf16>
    %c0_5 = arith.constant 0 : index
    %c0_6 = arith.constant 0 : index
    %c0_7 = arith.constant 0 : index
    %9 = vector.load %arg1[%c0_5, %c0_6, %c0_7] : memref<1x32x256xf32, #tpu.memory_space<vmem>>, vector<1x32x256xf32>
    %10 = vector.shape_cast %9 : vector<1x32x256xf32> to vector<32x256xf32>
    %11 = arith.truncf %10 : vector<32x256xf32> to vector<32x256xbf16>
    %c0_8 = arith.constant 0 : index
    %c128 = arith.constant 128 : index
    %12 = vector.load %arg9[%c0_8, %c128] : memref<32x512xbf16, #tpu.memory_space<vmem>>, vector<32x256xbf16>
    tpu.vector_store %arg9[%c0_8, %c128], %11 {strides = array<i32>} : memref<32x512xbf16, #tpu.memory_space<vmem>>, vector<32x256xbf16>,
    %c0_9 = arith.constant 0 : index
    %c111 = arith.constant 111 : index
    %13 = vector.load %arg9[%c0_9, %c111] : memref<32x512xbf16, #tpu.memory_space<vmem>>, vector<32x256xbf16>
    %14 = arith.mulf %13, %5 : vector<32x256xbf16>
    %c0_10 = arith.constant 0 : index
    %c0_11 = arith.constant 0 : index
    %15 = vector.load %arg10[%c0_10, %c0_11] : memref<288x256xbf16, #tpu.memory_space<vmem>>, vector<32x256xbf16>
    tpu.vector_store %arg10[%c0_10, %c0_11], %14 {strides = array<i32>} : memref<288x256xbf16, #tpu.memory_space<vmem>>, vector<32x256xbf16>,
    %c0_12 = arith.constant 0 : index
    %c112 = arith.constant 112 : index
    %16 = vector.load %arg9[%c0_12, %c112] : memref<32x512xbf16, #tpu.memory_space<vmem>>, vector<32x256xbf16>
    %c32 = arith.constant 32 : index
    %c0_13 = arith.constant 0 : index
    %17 = vector.load %arg10[%c32, %c0_13] : memref<288x256xbf16, #tpu.memory_space<vmem>>, vector<32x256xbf16>
    tpu.vector_store %arg10[%c32, %c0_13], %16 {strides = array<i32>} : memref<288x256xbf16, #tpu.memory_space<vmem>>, vector<32x256xbf16>,
    %c0_14 = arith.constant 0 : index
    %c113 = arith.constant 113 : index
    %18 = vector.load %arg9[%c0_14, %c113] : memref<32x512xbf16, #tpu.memory_space<vmem>>, vector<32x256xbf16>
    %19 = arith.mulf %18, %8 : vector<32x256xbf16>
    %c64 = arith.constant 64 : index
    %c0_15 = arith.constant 0 : index
    %20 = vector.load %arg10[%c64, %c0_15] : memref<288x256xbf16, #tpu.memory_space<vmem>>, vector<32x256xbf16>
    tpu.vector_store %arg10[%c64, %c0_15], %19 {strides = array<i32>} : memref<288x256xbf16, #tpu.memory_space<vmem>>, vector<32x256xbf16>,
    %c0_16 = arith.constant 0 : index
    %c127 = arith.constant 127 : index
    %21 = vector.load %arg9[%c0_16, %c127] : memref<32x512xbf16, #tpu.memory_space<vmem>>, vector<32x256xbf16>
    %22 = arith.mulf %21, %5 : vector<32x256xbf16>
    %c96 = arith.constant 96 : index
    %c0_17 = arith.constant 0 : index
    %23 = vector.load %arg10[%c96, %c0_17] : memref<288x256xbf16, #tpu.memory_space<vmem>>, vector<32x256xbf16>
    tpu.vector_store %arg10[%c96, %c0_17], %22 {strides = array<i32>} : memref<288x256xbf16, #tpu.memory_space<vmem>>, vector<32x256xbf16>,
    %c0_18 = arith.constant 0 : index
    %c128_19 = arith.constant 128 : index
    %24 = vector.load %arg9[%c0_18, %c128_19] : memref<32x512xbf16, #tpu.memory_space<vmem>>, vector<32x256xbf16>
    %c128_20 = arith.constant 128 : index
    %c0_21 = arith.constant 0 : index
    %25 = vector.load %arg10[%c128_20, %c0_21] : memref<288x256xbf16, #tpu.memory_space<vmem>>, vector<32x256xbf16>
    tpu.vector_store %arg10[%c128_20, %c0_21], %24 {strides = array<i32>} : memref<288x256xbf16, #tpu.memory_space<vmem>>, vector<32x256xbf16>,
    %c0_22 = arith.constant 0 : index
    %c129 = arith.constant 129 : index
    %26 = vector.load %arg9[%c0_22, %c129] : memref<32x512xbf16, #tpu.memory_space<vmem>>, vector<32x256xbf16>
    %27 = arith.mulf %26, %8 : vector<32x256xbf16>
    %c160 = arith.constant 160 : index
    %c0_23 = arith.constant 0 : index
    %28 = vector.load %arg10[%c160, %c0_23] : memref<288x256xbf16, #tpu.memory_space<vmem>>, vector<32x256xbf16>
    tpu.vector_store %arg10[%c160, %c0_23], %27 {strides = array<i32>} : memref<288x256xbf16, #tpu.memory_space<vmem>>, vector<32x256xbf16>,
    %c0_24 = arith.constant 0 : index
    %c143 = arith.constant 143 : index
    %29 = vector.load %arg9[%c0_24, %c143] : memref<32x512xbf16, #tpu.memory_space<vmem>>, vector<32x256xbf16>
    %30 = arith.mulf %29, %5 : vector<32x256xbf16>
    %c192 = arith.constant 192 : index
    %c0_25 = arith.constant 0 : index
    %31 = vector.load %arg10[%c192, %c0_25] : memref<288x256xbf16, #tpu.memory_space<vmem>>, vector<32x256xbf16>
    tpu.vector_store %arg10[%c192, %c0_25], %30 {strides = array<i32>} : memref<288x256xbf16, #tpu.memory_space<vmem>>, vector<32x256xbf16>,
    %c0_26 = arith.constant 0 : index
    %c144 = arith.constant 144 : index
    %32 = vector.load %arg9[%c0_26, %c144] : memref<32x512xbf16, #tpu.memory_space<vmem>>, vector<32x256xbf16>
    %c224 = arith.constant 224 : index
    %c0_27 = arith.constant 0 : index
    %33 = vector.load %arg10[%c224, %c0_27] : memref<288x256xbf16, #tpu.memory_space<vmem>>, vector<32x256xbf16>
    tpu.vector_store %arg10[%c224, %c0_27], %32 {strides = array<i32>} : memref<288x256xbf16, #tpu.memory_space<vmem>>, vector<32x256xbf16>,
    %c0_28 = arith.constant 0 : index
    %c145 = arith.constant 145 : index
    %34 = vector.load %arg9[%c0_28, %c145] : memref<32x512xbf16, #tpu.memory_space<vmem>>, vector<32x256xbf16>
    %35 = arith.mulf %34, %8 : vector<32x256xbf16>
    %c256 = arith.constant 256 : index
    %c0_29 = arith.constant 0 : index
    %36 = vector.load %arg10[%c256, %c0_29] : memref<288x256xbf16, #tpu.memory_space<vmem>>, vector<32x256xbf16>
    tpu.vector_store %arg10[%c256, %c0_29], %35 {strides = array<i32>} : memref<288x256xbf16, #tpu.memory_space<vmem>>, vector<32x256xbf16>,
    %c0_30 = arith.constant 0 : index
    %c0_31 = arith.constant 0 : index
    %37 = vector.load %arg3[%c0_30, %c0_31] : memref<64x288xbf16, #tpu.memory_space<vmem>>, vector<64x288xbf16>
    %c0_32 = arith.constant 0 : index
    %c0_33 = arith.constant 0 : index
    %38 = vector.load %arg10[%c0_32, %c0_33] : memref<288x256xbf16, #tpu.memory_space<vmem>>, vector<288x256xbf16>
    %cst_34 = arith.constant dense<0.000000e+00> : vector<64x256xf32>
    %39 = tpu.matmul %37, %38, %cst_34 {dimension_numbers = #tpu.dot_dimension_numbers<[1], [0], [0], [1], [0, 0, 1, 1], [], []>} : vector<64x288xbf16>, vector<288x256xbf16>, vector<64x256xf32> -> vector<64x256xf32>
    %c0_35 = arith.constant 0 : index
    %c0_36 = arith.constant 0 : index
    %40 = vector.load %arg4[%c0_35, %c0_36] : memref<64x1xf32, #tpu.memory_space<vmem>>, vector<64x1xf32>
    %41 = vector.broadcast %40 : vector<64x1xf32> to vector<64x256xf32>
    %42 = arith.addf %39, %41 : vector<64x256xf32>
    %cst_37 = arith.constant dense<0.000000e+00> : vector<64xf32>
    %43 = vector.multi_reduction <add>, %42, %cst_37 [1] : vector<64x256xf32> to vector<64xf32>
    %44 = vector.shape_cast %43 : vector<64xf32> to vector<64x1xf32>
    %cst_38 = arith.constant 2.560000e+02 : f32
    %45 = vector.broadcast %cst_38 : f32 to vector<64x1xf32>
    %46 = arith.divf %44, %45 : vector<64x1xf32>
    %c0_39 = arith.constant 0 : index
    %c0_40 = arith.constant 0 : index
    %47 = vector.load %arg5[%c0_39, %c0_40] : memref<64x4xf32, #tpu.memory_space<vmem>>, vector<64x4xf32>
    %48 = vector.broadcast %46 : vector<64x1xf32> to vector<64x4xf32>
    %49 = arith.mulf %47, %48 : vector<64x4xf32>
    %cst_41 = arith.constant dense<0.000000e+00> : vector<4xf32>
    %50 = vector.multi_reduction <add>, %49, %cst_41 [0] : vector<64x4xf32> to vector<4xf32>
    %51 = vector.shape_cast %50 : vector<4xf32> to vector<1x4xf32>
    %cst_42 = arith.constant 0.000000e+00 : f32
    %52 = vector.broadcast %cst_42 : f32 to vector<1x4xf32>
    %53 = arith.maximumf %51, %52 : vector<1x4xf32>
    %c0_43 = arith.constant 0 : index
    %c0_44 = arith.constant 0 : index
    %54 = vector.load %arg6[%c0_43, %c0_44] : memref<64x4xf32, #tpu.memory_space<vmem>>, vector<64x4xf32>
    %55 = vector.broadcast %53 : vector<1x4xf32> to vector<64x4xf32>
    %56 = arith.mulf %54, %55 : vector<64x4xf32>
    %cst_45 = arith.constant dense<0.000000e+00> : vector<64xf32>
    %57 = vector.multi_reduction <add>, %56, %cst_45 [1] : vector<64x4xf32> to vector<64xf32>
    %58 = vector.shape_cast %57 : vector<64xf32> to vector<64x1xf32>
    %59 = arith.negf %58 : vector<64x1xf32>
    %60 = math.exp %59 : vector<64x1xf32>
    %cst_46 = arith.constant 1.000000e+00 : f32
    %61 = vector.broadcast %cst_46 : f32 to vector<64x1xf32>
    %62 = arith.addf %61, %60 : vector<64x1xf32>
    %63 = arith.divf %61, %62 : vector<64x1xf32>
    %c0_47 = arith.constant 0 : index
    %64 = memref.load %arg7[%c0_47] : memref<3xf32, #tpu.memory_space<smem>>
    %c1_48 = arith.constant 1 : index
    %65 = memref.load %arg7[%c1_48] : memref<3xf32, #tpu.memory_space<smem>>
    %c2 = arith.constant 2 : index
    %66 = memref.load %arg7[%c2] : memref<3xf32, #tpu.memory_space<smem>>
    %67 = vector.extract_strided_slice %42 {offsets = [0, 0], sizes = [32, 256], strides = [1, 1]} : vector<64x256xf32> to vector<32x256xf32>
    %68 = vector.extract_strided_slice %63 {offsets = [0, 0], sizes = [32, 1], strides = [1, 1]} : vector<64x1xf32> to vector<32x1xf32>
    %69 = vector.broadcast %64 : f32 to vector<32x1xf32>
    %70 = arith.mulf %69, %68 : vector<32x1xf32>
    %71 = vector.broadcast %70 : vector<32x1xf32> to vector<32x256xf32>
    %72 = arith.mulf %67, %71 : vector<32x256xf32>
    %73 = vector.extract_strided_slice %42 {offsets = [32, 0], sizes = [32, 256], strides = [1, 1]} : vector<64x256xf32> to vector<32x256xf32>
    %74 = vector.extract_strided_slice %63 {offsets = [32, 0], sizes = [32, 1], strides = [1, 1]} : vector<64x1xf32> to vector<32x1xf32>
    %75 = vector.broadcast %65 : f32 to vector<32x1xf32>
    %76 = arith.mulf %75, %74 : vector<32x1xf32>
    %77 = vector.broadcast %76 : vector<32x1xf32> to vector<32x256xf32>
    %78 = arith.mulf %73, %77 : vector<32x256xf32>
    %79 = arith.addf %72, %78 : vector<32x256xf32>
    %c0_49 = arith.constant 0 : index
    %c0_50 = arith.constant 0 : index
    %c0_51 = arith.constant 0 : index
    %80 = vector.load %arg1[%c0_49, %c0_50, %c0_51] : memref<1x32x256xf32, #tpu.memory_space<vmem>>, vector<1x32x256xf32>
    %81 = vector.shape_cast %80 : vector<1x32x256xf32> to vector<32x256xf32>
    %82 = vector.broadcast %66 : f32 to vector<32x256xf32>
    %83 = arith.mulf %82, %81 : vector<32x256xf32>
    %84 = arith.addf %79, %83 : vector<32x256xf32>
    %c0_52 = arith.constant 0 : index
    %c0_53 = arith.constant 0 : index
    %c0_54 = arith.constant 0 : index
    %85 = vector.load %arg8[%c0_52, %c0_53, %c0_54] : memref<1x32x256xf32, #tpu.memory_space<vmem>>, vector<1x32x256xf32>
    %86 = vector.shape_cast %85 : vector<1x32x256xf32> to vector<32x256xf32>
    %87 = vector.shape_cast %84 : vector<32x256xf32> to vector<1x32x256xf32>
    tpu.vector_store %arg8[%c0_52, %c0_53, %c0_54], %87 {strides = array<i32>} : memref<1x32x256xf32, #tpu.memory_space<vmem>>, vector<1x32x256xf32>,
    return
  }
  func.func @transform_0(%arg0: i32) -> (i32, i32, i32) {
    %c0_i32 = arith.constant 0 : i32
    %c0_i32_0 = arith.constant 0 : i32
    %c0_i32_1 = arith.constant 0 : i32
    return %arg0, %c0_i32, %c0_i32_0 : i32, i32, i32
  }
  func.func @transform_1(%arg0: i32) -> (i32, i32) {
    %c0_i32 = arith.constant 0 : i32
    %c0_i32_0 = arith.constant 0 : i32
    %c0_i32_1 = arith.constant 0 : i32
    return %c0_i32, %c0_i32_0 : i32, i32
  }
  func.func @transform_2(%arg0: i32) -> (i32, i32) {
    %c0_i32 = arith.constant 0 : i32
    %c0_i32_0 = arith.constant 0 : i32
    %c0_i32_1 = arith.constant 0 : i32
    return %c0_i32, %c0_i32_0 : i32, i32
  }
  func.func @transform_3(%arg0: i32) -> (i32, i32) {
    %c0_i32 = arith.constant 0 : i32
    %c0_i32_0 = arith.constant 0 : i32
    %c0_i32_1 = arith.constant 0 : i32
    return %c0_i32, %c0_i32_0 : i32, i32
  }
  func.func @transform_4(%arg0: i32) -> (i32, i32) {
    %c0_i32 = arith.constant 0 : i32
    %c0_i32_0 = arith.constant 0 : i32
    %c0_i32_1 = arith.constant 0 : i32
    return %c0_i32, %c0_i32_0 : i32, i32
  }
  func.func @transform_5(%arg0: i32) -> (i32, i32) {
    %c0_i32 = arith.constant 0 : i32
    %c0_i32_0 = arith.constant 0 : i32
    %c0_i32_1 = arith.constant 0 : i32
    return %c0_i32, %c0_i32_0 : i32, i32
  }
  func.func @transform_6(%arg0: i32) -> i32 {
    %c0_i32 = arith.constant 0 : i32
    %c0_i32_0 = arith.constant 0 : i32
    return %c0_i32 : i32
  }
  func.func @transform_7(%arg0: i32) -> (i32, i32, i32) {
    %c0_i32 = arith.constant 0 : i32
    %c0_i32_0 = arith.constant 0 : i32
    %c0_i32_1 = arith.constant 0 : i32
    return %arg0, %c0_i32, %c0_i32_0 : i32, i32, i32
  }
}

</mosaic_0001>

<llo_original>
// kernel: multi_conv_block.1
$region0: #{multi_conv_block.1}
  #allocation0 [shape = 'u32[]', space=smem, size = 0x4, offset = 0x4, fixed_abs, tag = 'smem constant byte address 0x4 - core index']
  #allocation1 [shape = 'u32[72,128]{1,0:T(1,128)}', space=vmem, size = 0x9000, scoped, tag = 'internal scratch']
  #allocation2 [shape = 'bf16[32,512]{1,0:T(8,128)(2,1)}', space=vmem, size = 0x8000, scoped, tag = 'scratch operand']
  #allocation3 [shape = 'bf16[288,256]{1,0:T(8,128)(2,1)}', space=vmem, size = 0x24000, scoped, tag = 'scratch operand']
  %s0 = inlined_call_operand.vmem [shape: f32[2,32,256], index: 0, kind: input, shape index: {}]
  %s1 = inlined_call_operand.vmem [shape: bf16[2,256], index: 1, kind: input, shape index: {}]
  %s2 = inlined_call_operand.vmem [shape: bf16[64,288], index: 2, kind: input, shape index: {}]
  %s3 = inlined_call_operand.vmem [shape: f32[64,1], index: 3, kind: input, shape index: {}]
  %s4 = inlined_call_operand.vmem [shape: f32[64,4], index: 4, kind: input, shape index: {}]
  %s5 = inlined_call_operand.vmem [shape: f32[64,4], index: 5, kind: input, shape index: {}]
  %s6 = inlined_call_operand.vmem [shape: f32[3], index: 6, kind: input, shape index: {}]
  %s7 = inlined_call_operand.vmem [shape: f32[2,32,256], index: 7, kind: output, shape index: {}]
  %s8 = sld [smem:[#allocation0]]
  $region65: #{multi_conv_block.1} parent=0
    _
  %s10 = ssub.s32 1, %s8
  %s11 = scalar_select 0, %s10, %s8
  $region1: #{multi_conv_block.1} parent=0
    #allocation4 [shape = 'u8[512]{0}', space=smem, size = 0x200, scoped, tag = 'input window, operand 6, single buffered']
    #allocation5 [shape = 's32[2]{0}', space=sflag, size = 0x8, scoped, tag = 'scoped memory for multi_conv_block.1']
    %12 = vsyncpa [#allocation5], 0
    loop: start=0, step=1, limit=4
    $region2: #{multi_conv_block.1} parent=1 // loop_pre_header
      _
    $region3: #{multi_conv_block.1} parent=1 // loop_header
      %s14 = sphi 0, %s18
      %p15 = scmp.ge.s32.totalorder %s14, 4
      %s24 = sphi 0, %s26
      %s27 = sphi 0, %s24
      %s28 = sphi 0, %s27
      %s44 = sphi 0, %s28
      %s48 = sphi 0, %s48
      %s50 = sphi 0, %s48
      %s51 = sphi 0, %s50
      %s65 = sphi 0, %s51
      %s69 = sphi 0, %s69
      %s71 = sphi 0, %s69
      %s72 = sphi 0, %s71
      %s86 = sphi 0, %s72
      %s90 = sphi 0, %s90
      %s92 = sphi 0, %s90
      %s93 = sphi 0, %s92
      %s107 = sphi 0, %s93
      %s111 = sphi 0, %s111
      %s113 = sphi 0, %s111
      %s114 = sphi 0, %s113
      %s128 = sphi 0, %s114
      %s132 = sphi 0, %s132
      %s134 = sphi 0, %s132
      %s135 = sphi 0, %s134
      %s149 = sphi 0, %s135
      %s153 = sphi 0, %s153
      %s155 = sphi 0, %s153
      %s156 = sphi 0, %s155
      %s170 = sphi 0, %s156
      %s176 = sphi 0, %s178
      %s179 = sphi 0, %s176
      %s180 = sphi 0, %s179
      %s196 = sphi 0, %s180
    $region4: #{multi_conv_block.1} parent=1 // loop_header_branch
      %17 = sbr.rel (%p15) target = $region8
    $region5: #{multi_conv_block.1} parent=1 // loop_body
      %s19 = ssub.s32 %s14, 1
      %s20 = ssub.s32 %s14, 2
      %s21 = sadd.s32 %s14, 1
      %s22 = ssub.s32 %s14, %s21
      %p23 = scmp.eq.s32.totalorder %s22, 0
      %s25 = sadd.s32 %s24, 1
      %s26 = scalar_select %p23, %s24, %s25
      %p29 = pneg %p23
      %p30 = scmp.eq.s32.totalorder %s14, 1
      %p31 = por %p29, %p30
      %p32 = scmp.ne.s32.totalorder %s24, %s27
      %p33 = scmp.eq.s32.totalorder %s14, 0
      %p34 = por %p32, %p33
      %p35 = scmp.ne.s32.totalorder %s24, %s27
      %p36 = scmp.eq.s32.totalorder %s19, 1
      %p37 = por %p35, %p36
      %p38 = scmp.ne.s32.totalorder %s27, %s28
      %p39 = scmp.eq.s32.totalorder %s19, 0
      %p40 = por %p38, %p39
      %p41 = scmp.ne.s32.totalorder %s27, %s28
      %p42 = scmp.eq.s32.totalorder %s20, 1
      %p43 = por %p41, %p42
      %p45 = scmp.ne.s32.totalorder %s28, %s44
      %p46 = scmp.eq.s32.totalorder %s20, 0
      %p47 = por %p45, %p46
      %s49 = sadd.s32 %s48, 1
      %p52 = scmp.eq.s32.totalorder %s14, 1
      %p53 = scmp.ne.s32.totalorder %s48, %s50
      %p54 = scmp.eq.s32.totalorder %s14, 0
      %p55 = por %p53, %p54
      %p56 = scmp.ne.s32.totalorder %s48, %s50
      %p57 = scmp.eq.s32.totalorder %s19, 1
      %p58 = por %p56, %p57
      %p59 = scmp.ne.s32.totalorder %s50, %s51
      %p60 = scmp.eq.s32.totalorder %s19, 0
      %p61 = por %p59, %p60
      %p62 = scmp.ne.s32.totalorder %s50, %s51
      %p63 = scmp.eq.s32.totalorder %s20, 1
      %p64 = por %p62, %p63
      %p66 = scmp.ne.s32.totalorder %s51, %s65
      %p67 = scmp.eq.s32.totalorder %s20, 0
      %p68 = por %p66, %p67
      %s70 = sadd.s32 %s69, 1
      %p73 = scmp.eq.s32.totalorder %s14, 1
      %p74 = scmp.ne.s32.totalorder %s69, %s71
      %p75 = scmp.eq.s32.totalorder %s14, 0
      %p76 = por %p74, %p75
      %p77 = scmp.ne.s32.totalorder %s69, %s71
      %p78 = scmp.eq.s32.totalorder %s19, 1
      %p79 = por %p77, %p78
      %p80 = scmp.ne.s32.totalorder %s71, %s72
      %p81 = scmp.eq.s32.totalorder %s19, 0
      %p82 = por %p80, %p81
      %p83 = scmp.ne.s32.totalorder %s71, %s72
      %p84 = scmp.eq.s32.totalorder %s20, 1
      %p85 = por %p83, %p84
      %p87 = scmp.ne.s32.totalorder %s72, %s86
      %p88 = scmp.eq.s32.totalorder %s20, 0
      %p89 = por %p87, %p88
      %s91 = sadd.s32 %s90, 1
      %p94 = scmp.eq.s32.totalorder %s14, 1
      %p95 = scmp.ne.s32.totalorder %s90, %s92
      %p96 = scmp.eq.s32.totalorder %s14, 0
      %p97 = por %p95, %p96
      %p98 = scmp.ne.s32.totalorder %s90, %s92
      %p99 = scmp.eq.s32.totalorder %s19, 1
      %p100 = por %p98, %p99
      %p101 = scmp.ne.s32.totalorder %s92, %s93
      %p102 = scmp.eq.s32.totalorder %s19, 0
      %p103 = por %p101, %p102
      %p104 = scmp.ne.s32.totalorder %s92, %s93
      %p105 = scmp.eq.s32.totalorder %s20, 1
      %p106 = por %p104, %p105
      %p108 = scmp.ne.s32.totalorder %s93, %s107
      %p109 = scmp.eq.s32.totalorder %s20, 0
      %p110 = por %p108, %p109
      %s112 = sadd.s32 %s111, 1
      %p115 = scmp.eq.s32.totalorder %s14, 1
      %p116 = scmp.ne.s32.totalorder %s111, %s113
      %p117 = scmp.eq.s32.totalorder %s14, 0
      %p118 = por %p116, %p117
      %p119 = scmp.ne.s32.totalorder %s111, %s113
      %p120 = scmp.eq.s32.totalorder %s19, 1
      %p121 = por %p119, %p120
      %p122 = scmp.ne.s32.totalorder %s113, %s114
      %p123 = scmp.eq.s32.totalorder %s19, 0
      %p124 = por %p122, %p123
      %p125 = scmp.ne.s32.totalorder %s113, %s114
      %p126 = scmp.eq.s32.totalorder %s20, 1
      %p127 = por %p125, %p126
      %p129 = scmp.ne.s32.totalorder %s114, %s128
      %p130 = scmp.eq.s32.totalorder %s20, 0
      %p131 = por %p129, %p130
      %s133 = sadd.s32 %s132, 1
      %p136 = scmp.eq.s32.totalorder %s14, 1
      %p137 = scmp.ne.s32.totalorder %s132, %s134
      %p138 = scmp.eq.s32.totalorder %s14, 0
      %p139 = por %p137, %p138
      %p140 = scmp.ne.s32.totalorder %s132, %s134
      %p141 = scmp.eq.s32.totalorder %s19, 1
      %p142 = por %p140, %p141
      %p143 = scmp.ne.s32.totalorder %s134, %s135
      %p144 = scmp.eq.s32.totalorder %s19, 0
      %p145 = por %p143, %p144
      %p146 = scmp.ne.s32.totalorder %s134, %s135
      %p147 = scmp.eq.s32.totalorder %s20, 1
      %p148 = por %p146, %p147
      %p150 = scmp.ne.s32.totalorder %s135, %s149
      %p151 = scmp.eq.s32.totalorder %s20, 0
      %p152 = por %p150, %p151
      %s154 = sadd.s32 %s153, 1
      %p157 = scmp.eq.s32.totalorder %s14, 1
      %p158 = scmp.ne.s32.totalorder %s153, %s155
      %p159 = scmp.eq.s32.totalorder %s14, 0
      %p160 = por %p158, %p159
      %p161 = scmp.ne.s32.totalorder %s153, %s155
      %p162 = scmp.eq.s32.totalorder %s19, 1
      %p163 = por %p161, %p162
      %p164 = scmp.ne.s32.totalorder %s155, %s156
      %p165 = scmp.eq.s32.totalorder %s19, 0
      %p166 = por %p164, %p165
      %p167 = scmp.ne.s32.totalorder %s155, %s156
      %p168 = scmp.eq.s32.totalorder %s20, 1
      %p169 = por %p167, %p168
      %p171 = scmp.ne.s32.totalorder %s156, %s170
      %p172 = scmp.eq.s32.totalorder %s20, 0
      %p173 = por %p171, %p172
      %s174 = ssub.s32 %s14, %s21
      %p175 = scmp.eq.s32.totalorder %s174, 0
      %s177 = sadd.s32 %s176, 1
      %s178 = scalar_select %p175, %s176, %s177
      %p181 = pneg %p175
      %p182 = scmp.eq.s32.totalorder %s14, 1
      %p183 = por %p181, %p182
      %p184 = scmp.ne.s32.totalorder %s176, %s179
      %p185 = scmp.eq.s32.totalorder %s14, 0
      %p186 = por %p184, %p185
      %p187 = scmp.ne.s32.totalorder %s176, %s179
      %p188 = scmp.eq.s32.totalorder %s19, 1
      %p189 = por %p187, %p188
      %p190 = scmp.ne.s32.totalorder %s179, %s180
      %p191 = scmp.eq.s32.totalorder %s19, 0
      %p192 = por %p190, %p191
      %p193 = scmp.ne.s32.totalorder %s179, %s180
      %p194 = scmp.eq.s32.totalorder %s20, 1
      %p195 = por %p193, %p194
      %p197 = scmp.ne.s32.totalorder %s180, %s196
      %p198 = scmp.eq.s32.totalorder %s20, 0
      %p199 = por %p197, %p198
      %p200 = scmp.le.s32.totalorder 1, %s14
      %p201 = scmp.lt.s32.totalorder %s14, 3
      %p202 = pnand %p200, %p201
      %p203 = pneg %p202
      // Predicated region
      $region9: #{multi_conv_block.1} parent=5 // pred_check
        _
      $region10: #{multi_conv_block.1} parent=5 // pred_check_branch
        %205 = sbr.rel (%p202) target = $region12
      $region11: #{multi_conv_block.1} parent=5 // pred_region
        %s206 = ssub.s32 %s14, 1
        // Predicated region
        $region13: #{multi_conv_block.1} parent=11 // pred_check
          %p207 = pneg %p61
        $region14: #{multi_conv_block.1} parent=11 // pred_check_branch
          %209 = sbr.rel (%p207) target = $region16
        $region15: #{multi_conv_block.1} parent=11 // pred_region
          _
        $region16: #{multi_conv_block.1} parent=11 // pred_fallthru
          _
        // Predicated region
        $region17: #{multi_conv_block.1} parent=11 // pred_check
          %p210 = pneg %p82
        $region18: #{multi_conv_block.1} parent=11 // pred_check_branch
          %212 = sbr.rel (%p210) target = $region20
        $region19: #{multi_conv_block.1} parent=11 // pred_region
          _
        $region20: #{multi_conv_block.1} parent=11 // pred_fallthru
          _
        // Predicated region
        $region21: #{multi_conv_block.1} parent=11 // pred_check
          %p213 = pneg %p103
        $region22: #{multi_conv_block.1} parent=11 // pred_check_branch
          %215 = sbr.rel (%p213) target = $region24
        $region23: #{multi_conv_block.1} parent=11 // pred_region
          _
        $region24: #{multi_conv_block.1} parent=11 // pred_fallthru
          _
        // Predicated region
        $region25: #{multi_conv_block.1} parent=11 // pred_check
          %p216 = pneg %p124
        $region26: #{multi_conv_block.1} parent=11 // pred_check_branch
          %218 = sbr.rel (%p216) target = $region28
        $region27: #{multi_conv_block.1} parent=11 // pred_region
          _
        $region28: #{multi_conv_block.1} parent=11 // pred_fallthru
          _
        // Predicated region
        $region29: #{multi_conv_block.1} parent=11 // pred_check
          %p219 = pneg %p145
        $region30: #{multi_conv_block.1} parent=11 // pred_check_branch
          %221 = sbr.rel (%p219) target = $region32
        $region31: #{multi_conv_block.1} parent=11 // pred_region
          _
        $region32: #{multi_conv_block.1} parent=11 // pred_fallthru
          _
        // Predicated region
        $region33: #{multi_conv_block.1} parent=11 // pred_check
          %p222 = pneg %p166
        $region34: #{multi_conv_block.1} parent=11 // pred_check_branch
          %224 = sbr.rel (%p222) target = $region36
        $region35: #{multi_conv_block.1} parent=11 // pred_region
          %226 = vsyncadd [#allocation5], 0
          %s228 = sshll.u32 %s6, 4
          %s229 = int_to_ptr.vmem [resolvable:$true] %s228
          %231 = dma.vmem_to_smem %s229, 16, [#allocation4], [#allocation5]
        $region36: #{multi_conv_block.1} parent=11 // pred_fallthru
          _
      $region12: #{multi_conv_block.1} parent=5 // pred_fallthru
        _
      %p232 = scmp.lt.s32.totalorder %s14, 2
      // Predicated region
      $region37: #{multi_conv_block.1} parent=5 // pred_check
        %p233 = pneg %p232
      $region38: #{multi_conv_block.1} parent=5 // pred_check_branch
        %235 = sbr.rel (%p233) target = $region40
      $region39: #{multi_conv_block.1} parent=5 // pred_region
        // Predicated region
        $region41: #{multi_conv_block.1} parent=39 // pred_check
          %p236 = pneg %p34
        $region42: #{multi_conv_block.1} parent=39 // pred_check_branch
          %238 = sbr.rel (%p236) target = $region44
        $region43: #{multi_conv_block.1} parent=39 // pred_region
          %p239 = scmp.lt.s32.totalorder %s14, 1
          %s240 = scalar_select %p239, %s14, 1
          %s241 = smul.addr %s240, 8
          %s242 = smul.addr %s241, 8
          %s243 = scalar_lea.vmem %s0, %s242
        $region44: #{multi_conv_block.1} parent=39 // pred_fallthru
          _
      $region40: #{multi_conv_block.1} parent=5 // pred_fallthru
        _
      %p244 = scmp.le.s32.totalorder 1, %s14
      %p245 = scmp.lt.s32.totalorder %s14, 3
      %p246 = pnand %p244, %p245
      %p247 = pneg %p246
      // Predicated region
      $region45: #{multi_conv_block.1} parent=5 // pred_check
        _
      $region46: #{multi_conv_block.1} parent=5 // pred_check_branch
        %249 = sbr.rel (%p246) target = $region48
      $region47: #{multi_conv_block.1} parent=5 // pred_region
        %s250 = ssub.s32 %s14, 1
        // Predicated region
        $region49: #{multi_conv_block.1} parent=47 // pred_check
          %p251 = pneg %p166
        $region50: #{multi_conv_block.1} parent=47 // pred_check_branch
          %253 = sbr.rel (%p251) target = $region52
        $region51: #{multi_conv_block.1} parent=47 // pred_region
          %255 = dma.done [#allocation5], 16
        $region52: #{multi_conv_block.1} parent=47 // pred_fallthru
          _
        %256 = sfence
        %p257 = scmp.lt.s32.totalorder %s19, 1
        %s258 = scalar_select %p257, %s19, 1
        %s259 = smul.addr %s258, 8
        %s260 = smul.addr %s259, 8
        %s261 = scalar_lea.vmem %s0, %s260
        %p262 = pneg %p40
        %p263 = pneg %p37
        %p264 = pneg %p61
        %p265 = pneg %p58
        %p266 = pneg %p82
        %p267 = pneg %p79
        %p268 = pneg %p103
        %p269 = pneg %p100
        %p270 = pneg %p124
        %p271 = pneg %p121
        %p272 = pneg %p145
        %p273 = pneg %p142
        %p274 = pneg %p166
        %p275 = pneg %p163
        %p276 = pneg %p192
        %p277 = pneg %p189
        %p278 = scmp.lt.s32.totalorder %s19, 1
        %s279 = scalar_select %p278, %s19, 1
        %s280 = smul.addr %s279, 8
        %s281 = smul.addr %s280, 8
        %s282 = scalar_lea.vmem %s7, %s281
        %p283 = scmp.lt.s32.totalorder %s19, 1
        %s284 = scalar_select %p283, %s19, 1
        %s285 = smul.addr %s284, 8
        %s286 = smul.addr %s285, 8
        %s287 = scalar_lea.vmem %s0, %s286
        %p288 = scmp.lt.s32.totalorder %s19, 1
        %s289 = scalar_select %p288, %s19, 1
        %s290 = smul.addr %s289, 8
        %s291 = smul.addr %s290, 8
        %s292 = scalar_lea.vmem %s7, %s291
        %294 = vst [vmem:[#allocation2] sm:$0xf] 0
        %295 = vst [vmem:[#allocation2 + $0x10] sm:$0xf] 0
        %296 = vst [vmem:[#allocation2 + $0x20] sm:$0xf] 0
        %297 = vst [vmem:[#allocation2 + $0x30] sm:$0xf] 0
        %298 = vst [vmem:[#allocation2 + $0xc] sm:$0xf] 0
        %299 = vst [vmem:[#allocation2 + $0x1c] sm:$0xf] 0
        %300 = vst [vmem:[#allocation2 + $0x2c] sm:$0xf] 0
        %301 = vst [vmem:[#allocation2 + $0x3c] sm:$0xf] 0
        %v302 = vld [vmem:[%s1] sm:$0x3]
        %304 = vst [vmem:[#allocation1] ss:$9 sm:$0xff] %v302
        %v305 = vld [vmem:[#allocation1] sm:$0xff]
        %v306 = vld [vmem:[#allocation1 + $0x9] sm:$0xff]
        %v307 = vpack.i.b16 %v305, %v305
        %v309 = vperm.slane %v307, 0
        %v310 = vpack.i.b16 %v306, %v306
        %v312 = vperm.slane %v310, 0
        %v313 = vld [vmem:[%s1] sm:$0x3]
        %315 = vst [vmem:[#allocation1] ss:$9 sm:$0xff] %v313
        %v316 = vld [vmem:[#allocation1] sm:$0xff]
        %v317 = vld [vmem:[#allocation1 + $0x9] sm:$0xff]
        %v318 = vshrl.u32 %v316, 16
        %v319 = vpack.i.b16 %v318, %v318
        %v321 = vperm.slane %v319, 0
        %v322 = vshrl.u32 %v317, 16
        %v323 = vpack.i.b16 %v322, %v322
        %v325 = vperm.slane %v323, 0
        %v326 = vld [vmem:[%s287] sm:$0xff]
        %v327 = vld [vmem:[%s287 + $0x8] sm:$0xff]
        %v328 = vld [vmem:[%s287 + $0x10] sm:$0xff]
        %v329 = vld [vmem:[%s287 + $0x18] sm:$0xff]
        %v330 = vld [vmem:[%s287 + $0x20] sm:$0xff]
        %v331 = vld [vmem:[%s287 + $0x28] sm:$0xff]
        %v332 = vld [vmem:[%s287 + $0x30] sm:$0xff]
        %v333 = vld [vmem:[%s287 + $0x38] sm:$0xff]
        %v334 = vpack.c.bf16 %v327, %v326
        %v335 = vpack.c.bf16 %v329, %v328
        %v336 = vpack.c.bf16 %v331, %v330
        %v337 = vpack.c.bf16 %v333, %v332
        %338 = vst [vmem:[#allocation2 + $0x4] sm:$0xff] %v334
        %339 = vst [vmem:[#allocation2 + $0x14] sm:$0xff] %v335
        %340 = vst [vmem:[#allocation2 + $0x24] sm:$0xff] %v336
        %341 = vst [vmem:[#allocation2 + $0x34] sm:$0xff] %v337
        %v342 = vld [vmem:[#allocation2] sm:$0xff]
        %v343 = vld [vmem:[#allocation2 + $0x8] sm:$0xf]
        %v344 = vld [vmem:[#allocation2 + $0x10] sm:$0xff]
        %v345 = vld [vmem:[#allocation2 + $0x18] sm:$0xf]
        %v346 = vld [vmem:[#allocation2 + $0x20] sm:$0xff]
        %v347 = vld [vmem:[#allocation2 + $0x28] sm:$0xf]
        %v348 = vld [vmem:[#allocation2 + $0x30] sm:$0xff]
        %v349 = vld [vmem:[#allocation2 + $0x38] sm:$0xf]
        %v350 = vunpack.c.l.bf16 %v342
        %v351 = vunpack.c.h.bf16 %v342
        %v352 = vunpack.c.l.bf16 %v343
        %v353 = vunpack.c.l.bf16 %v344
        %v354 = vunpack.c.h.bf16 %v344
        %v355 = vunpack.c.l.bf16 %v345
        %v356 = vunpack.c.l.bf16 %v346
        %v357 = vunpack.c.h.bf16 %v346
        %v358 = vunpack.c.l.bf16 %v347
        %v359 = vunpack.c.l.bf16 %v348
        %v360 = vunpack.c.h.bf16 %v348
        %v361 = vunpack.c.l.bf16 %v349
        %v362 = vunpack.c.l.bf16 %v309
        %v363 = vunpack.c.l.bf16 %v312
        %366 = vrot.lane.b32.xlu0 %v362, 111
        %v367 = vpop.permute.xlu0 %366
        %368 = vrot.lane.b32.xlu0 %v363, 111
        %v369 = vpop.permute.xlu0 %368
        %vm370 = vcmask 908288
        %v371 = vsel %vm370, %v367, %v369
        %v375 = vmul.f32 %v350, %v367
        %v376 = vmul.f32 %v351, %v371
        %v377 = vmul.f32 %v352, %v369
        %v378 = vmul.f32 %v353, %v367
        %v379 = vmul.f32 %v354, %v371
        %v380 = vmul.f32 %v355, %v369
        %v381 = vmul.f32 %v356, %v367
        %v382 = vmul.f32 %v357, %v371
        %v383 = vmul.f32 %v358, %v369
        %v384 = vmul.f32 %v359, %v367
        %v385 = vmul.f32 %v360, %v371
        %v386 = vmul.f32 %v361, %v369
        %v387 = vpack.c.bf16 %v376, %v375
        %v388 = vpack.c.bf16 %v377, %v377
        %v389 = vpack.c.bf16 %v379, %v378
        %v390 = vpack.c.bf16 %v380, %v380
        %v391 = vpack.c.bf16 %v382, %v381
        %v392 = vpack.c.bf16 %v383, %v383
        %v393 = vpack.c.bf16 %v385, %v384
        %v394 = vpack.c.bf16 %v386, %v386
        %403 = vrot.lane.b32.xlu0 %v387, 17
        %v404 = vpop.permute.xlu0 %403
        %405 = vrot.lane.b32.xlu0 %v388, 17
        %v406 = vpop.permute.xlu0 %405
        %407 = vrot.lane.b32.xlu0 %v389, 17
        %v408 = vpop.permute.xlu0 %407
        %409 = vrot.lane.b32.xlu0 %v390, 17
        %v410 = vpop.permute.xlu0 %409
        %411 = vrot.lane.b32.xlu0 %v391, 17
        %v412 = vpop.permute.xlu0 %411
        %413 = vrot.lane.b32.xlu0 %v392, 17
        %v414 = vpop.permute.xlu0 %413
        %415 = vrot.lane.b32.xlu0 %v393, 17
        %v416 = vpop.permute.xlu0 %415
        %417 = vrot.lane.b32.xlu0 %v394, 17
        %v418 = vpop.permute.xlu0 %417
        %v419 = vrot.slane %v404, 4
        %v420 = vrot.slane %v406, 4
        %v421 = vrot.slane %v408, 4
        %v422 = vrot.slane %v410, 4
        %v423 = vrot.slane %v412, 4
        %v424 = vrot.slane %v414, 4
        %v425 = vrot.slane %v416, 4
        %v426 = vrot.slane %v418, 4
        %vm427 = vcmask 1043456
        %v428 = vsel %vm427, %v419, %v420
        %vm429 = vcmask 138240
        %v430 = vsel %vm429, %v404, %v428
        %v431 = vsel %vm427, %v421, %v422
        %v432 = vsel %vm429, %v408, %v431
        %v433 = vsel %vm427, %v423, %v424
        %v434 = vsel %vm429, %v412, %v433
        %v435 = vsel %vm427, %v425, %v426
        %v436 = vsel %vm429, %v416, %v435
        %441 = vst [vmem:[#allocation3] sm:$0xff] %v430
        %442 = vst [vmem:[#allocation3 + $0x8] sm:$0xff] %v432
        %443 = vst [vmem:[#allocation3 + $0x10] sm:$0xff] %v434
        %444 = vst [vmem:[#allocation3 + $0x18] sm:$0xff] %v436
        %v445 = vld [vmem:[#allocation2] sm:$0xff]
        %v446 = vld [vmem:[#allocation2 + $0x8] sm:$0xf]
        %v447 = vld [vmem:[#allocation2 + $0x10] sm:$0xff]
        %v448 = vld [vmem:[#allocation2 + $0x18] sm:$0xf]
        %v449 = vld [vmem:[#allocation2 + $0x20] sm:$0xff]
        %v450 = vld [vmem:[#allocation2 + $0x28] sm:$0xf]
        %v451 = vld [vmem:[#allocation2 + $0x30] sm:$0xff]
        %v452 = vld [vmem:[#allocation2 + $0x38] sm:$0xf]
        %461 = vrot.lane.b32.xlu0 %v445, 16
        %v462 = vpop.permute.xlu0 %461
        %463 = vrot.lane.b32.xlu0 %v446, 16
        %v464 = vpop.permute.xlu0 %463
        %465 = vrot.lane.b32.xlu0 %v447, 16
        %v466 = vpop.permute.xlu0 %465
        %467 = vrot.lane.b32.xlu0 %v448, 16
        %v468 = vpop.permute.xlu0 %467
        %469 = vrot.lane.b32.xlu0 %v449, 16
        %v470 = vpop.permute.xlu0 %469
        %471 = vrot.lane.b32.xlu0 %v450, 16
        %v472 = vpop.permute.xlu0 %471
        %473 = vrot.lane.b32.xlu0 %v451, 16
        %v474 = vpop.permute.xlu0 %473
        %475 = vrot.lane.b32.xlu0 %v452, 16
        %v476 = vpop.permute.xlu0 %475
        %v477 = vrot.slane %v462, 4
        %v478 = vrot.slane %v464, 4
        %v479 = vrot.slane %v466, 4
        %v480 = vrot.slane %v468, 4
        %v481 = vrot.slane %v470, 4
        %v482 = vrot.slane %v472, 4
        %v483 = vrot.slane %v474, 4
        %v484 = vrot.slane %v476, 4
        %v485 = vsel %vm427, %v477, %v478
        %vm486 = vcmask 130048
        %v487 = vsel %vm486, %v462, %v485
        %v488 = vsel %vm427, %v479, %v480
        %v489 = vsel %vm486, %v466, %v488
        %v490 = vsel %vm427, %v481, %v482
        %v491 = vsel %vm486, %v470, %v490
        %v492 = vsel %vm427, %v483, %v484
        %v493 = vsel %vm486, %v474, %v492
        %498 = vst [vmem:[#allocation3 + $0x20] sm:$0xff] %v487
        %499 = vst [vmem:[#allocation3 + $0x28] sm:$0xff] %v489
        %500 = vst [vmem:[#allocation3 + $0x30] sm:$0xff] %v491
        %501 = vst [vmem:[#allocation3 + $0x38] sm:$0xff] %v493
        %v502 = vld [vmem:[#allocation2] sm:$0xff]
        %v503 = vld [vmem:[#allocation2 + $0x8] sm:$0xf]
        %v504 = vld [vmem:[#allocation2 + $0x10] sm:$0xff]
        %v505 = vld [vmem:[#allocation2 + $0x18] sm:$0xf]
        %v506 = vld [vmem:[#allocation2 + $0x20] sm:$0xff]
        %v507 = vld [vmem:[#allocation2 + $0x28] sm:$0xf]
        %v508 = vld [vmem:[#allocation2 + $0x30] sm:$0xff]
        %v509 = vld [vmem:[#allocation2 + $0x38] sm:$0xf]
        %v510 = vunpack.c.l.bf16 %v502
        %v511 = vunpack.c.h.bf16 %v502
        %v512 = vunpack.c.l.bf16 %v503
        %v513 = vunpack.c.l.bf16 %v504
        %v514 = vunpack.c.h.bf16 %v504
        %v515 = vunpack.c.l.bf16 %v505
        %v516 = vunpack.c.l.bf16 %v506
        %v517 = vunpack.c.h.bf16 %v506
        %v518 = vunpack.c.l.bf16 %v507
        %v519 = vunpack.c.l.bf16 %v508
        %v520 = vunpack.c.h.bf16 %v508
        %v521 = vunpack.c.l.bf16 %v509
        %v522 = vunpack.c.l.bf16 %v321
        %v523 = vunpack.c.l.bf16 %v325
        %526 = vrot.lane.b32.xlu0 %v522, 113
        %v527 = vpop.permute.xlu0 %526
        %528 = vrot.lane.b32.xlu0 %v523, 113
        %v529 = vpop.permute.xlu0 %528
        %vm530 = vcmask 924672
        %v531 = vsel %vm530, %v527, %v529
        %v535 = vmul.f32 %v510, %v527
        %v536 = vmul.f32 %v511, %v531
        %v537 = vmul.f32 %v512, %v529
        %v538 = vmul.f32 %v513, %v527
        %v539 = vmul.f32 %v514, %v531
        %v540 = vmul.f32 %v515, %v529
        %v541 = vmul.f32 %v516, %v527
        %v542 = vmul.f32 %v517, %v531
        %v543 = vmul.f32 %v518, %v529
        %v544 = vmul.f32 %v519, %v527
        %v545 = vmul.f32 %v520, %v531
        %v546 = vmul.f32 %v521, %v529
        %v547 = vpack.c.bf16 %v536, %v535
        %v548 = vpack.c.bf16 %v537, %v537
        %v549 = vpack.c.bf16 %v539, %v538
        %v550 = vpack.c.bf16 %v540, %v540
        %v551 = vpack.c.bf16 %v542, %v541
        %v552 = vpack.c.bf16 %v543, %v543
        %v553 = vpack.c.bf16 %v545, %v544
        %v554 = vpack.c.bf16 %v546, %v546
        %563 = vrot.lane.b32.xlu0 %v547, 15
        %v564 = vpop.permute.xlu0 %563
        %565 = vrot.lane.b32.xlu0 %v548, 15
        %v566 = vpop.permute.xlu0 %565
        %567 = vrot.lane.b32.xlu0 %v549, 15
        %v568 = vpop.permute.xlu0 %567
        %569 = vrot.lane.b32.xlu0 %v550, 15
        %v570 = vpop.permute.xlu0 %569
        %571 = vrot.lane.b32.xlu0 %v551, 15
        %v572 = vpop.permute.xlu0 %571
        %573 = vrot.lane.b32.xlu0 %v552, 15
        %v574 = vpop.permute.xlu0 %573
        %575 = vrot.lane.b32.xlu0 %v553, 15
        %v576 = vpop.permute.xlu0 %575
        %577 = vrot.lane.b32.xlu0 %v554, 15
        %v578 = vpop.permute.xlu0 %577
        %v579 = vrot.slane %v564, 4
        %v580 = vrot.slane %v566, 4
        %v581 = vrot.slane %v568, 4
        %v582 = vrot.slane %v570, 4
        %v583 = vrot.slane %v572, 4
        %v584 = vrot.slane %v574, 4
        %v585 = vrot.slane %v576, 4
        %v586 = vrot.slane %v578, 4
        %v587 = vsel %vm427, %v579, %v580
        %vm588 = vcmask 121856
        %v589 = vsel %vm588, %v564, %v587
        %v590 = vsel %vm427, %v581, %v582
        %v591 = vsel %vm588, %v568, %v590
        %v592 = vsel %vm427, %v583, %v584
        %v593 = vsel %vm588, %v572, %v592
        %v594 = vsel %vm427, %v585, %v586
        %v595 = vsel %vm588, %v576, %v594
        %600 = vst [vmem:[#allocation3 + $0x40] sm:$0xff] %v589
        %601 = vst [vmem:[#allocation3 + $0x48] sm:$0xff] %v591
        %602 = vst [vmem:[#allocation3 + $0x50] sm:$0xff] %v593
        %603 = vst [vmem:[#allocation3 + $0x58] sm:$0xff] %v595
        %v604 = vld [vmem:[#allocation2] sm:$0xff]
        %v605 = vld [vmem:[#allocation2 + $0x8] sm:$0xf]
        %v606 = vld [vmem:[#allocation2 + $0x10] sm:$0xff]
        %v607 = vld [vmem:[#allocation2 + $0x18] sm:$0xf]
        %v608 = vld [vmem:[#allocation2 + $0x20] sm:$0xff]
        %v609 = vld [vmem:[#allocation2 + $0x28] sm:$0xf]
        %v610 = vld [vmem:[#allocation2 + $0x30] sm:$0xff]
        %v611 = vld [vmem:[#allocation2 + $0x38] sm:$0xf]
        %v612 = vunpack.c.l.bf16 %v604
        %v613 = vunpack.c.h.bf16 %v604
        %v614 = vunpack.c.l.bf16 %v605
        %v615 = vunpack.c.l.bf16 %v606
        %v616 = vunpack.c.h.bf16 %v606
        %v617 = vunpack.c.l.bf16 %v607
        %v618 = vunpack.c.l.bf16 %v608
        %v619 = vunpack.c.h.bf16 %v608
        %v620 = vunpack.c.l.bf16 %v609
        %v621 = vunpack.c.l.bf16 %v610
        %v622 = vunpack.c.h.bf16 %v610
        %v623 = vunpack.c.l.bf16 %v611
        %624 = vrot.lane.b32.xlu0 %v362, 127
        %v625 = vpop.permute.xlu0 %624
        %626 = vrot.lane.b32.xlu0 %v363, 127
        %v627 = vpop.permute.xlu0 %626
        %vm628 = vcmask 1039360
        %v629 = vsel %vm628, %v625, %v627
        %v633 = vmul.f32 %v612, %v625
        %v634 = vmul.f32 %v613, %v629
        %v635 = vmul.f32 %v614, %v627
        %v636 = vmul.f32 %v615, %v625
        %v637 = vmul.f32 %v616, %v629
        %v638 = vmul.f32 %v617, %v627
        %v639 = vmul.f32 %v618, %v625
        %v640 = vmul.f32 %v619, %v629
        %v641 = vmul.f32 %v620, %v627
        %v642 = vmul.f32 %v621, %v625
        %v643 = vmul.f32 %v622, %v629
        %v644 = vmul.f32 %v623, %v627
        %v645 = vpack.c.bf16 %v634, %v633
        %v646 = vpack.c.bf16 %v635, %v635
        %v647 = vpack.c.bf16 %v637, %v636
        %v648 = vpack.c.bf16 %v638, %v638
        %v649 = vpack.c.bf16 %v640, %v639
        %v650 = vpack.c.bf16 %v641, %v641
        %v651 = vpack.c.bf16 %v643, %v642
        %v652 = vpack.c.bf16 %v644, %v644
        %661 = vrot.lane.b32.xlu0 %v645, 1
        %v662 = vpop.permute.xlu0 %661
        %663 = vrot.lane.b32.xlu0 %v646, 1
        %v664 = vpop.permute.xlu0 %663
        %665 = vrot.lane.b32.xlu0 %v647, 1
        %v666 = vpop.permute.xlu0 %665
        %667 = vrot.lane.b32.xlu0 %v648, 1
        %v668 = vpop.permute.xlu0 %667
        %669 = vrot.lane.b32.xlu0 %v649, 1
        %v670 = vpop.permute.xlu0 %669
        %671 = vrot.lane.b32.xlu0 %v650, 1
        %v672 = vpop.permute.xlu0 %671
        %673 = vrot.lane.b32.xlu0 %v651, 1
        %v674 = vpop.permute.xlu0 %673
        %675 = vrot.lane.b32.xlu0 %v652, 1
        %v676 = vpop.permute.xlu0 %675
        %v677 = vrot.slane %v662, 4
        %v678 = vrot.slane %v664, 4
        %v679 = vrot.slane %v666, 4
        %v680 = vrot.slane %v668, 4
        %v681 = vrot.slane %v670, 4
        %v682 = vrot.slane %v672, 4
        %v683 = vrot.slane %v674, 4
        %v684 = vrot.slane %v676, 4
        %v685 = vsel %vm427, %v677, %v678
        %vm686 = vcmask 7168
        %v687 = vsel %vm686, %v662, %v685
        %v688 = vsel %vm427, %v679, %v680
        %v689 = vsel %vm686, %v666, %v688
        %v690 = vsel %vm427, %v681, %v682
        %v691 = vsel %vm686, %v670, %v690
        %v692 = vsel %vm427, %v683, %v684
        %v693 = vsel %vm686, %v674, %v692
        %698 = vst [vmem:[#allocation3 + $0x60] sm:$0xff] %v687
        %699 = vst [vmem:[#allocation3 + $0x68] sm:$0xff] %v689
        %700 = vst [vmem:[#allocation3 + $0x70] sm:$0xff] %v691
        %701 = vst [vmem:[#allocation3 + $0x78] sm:$0xff] %v693
        %v702 = vld [vmem:[#allocation2 + $0x4] sm:$0xff]
        %v703 = vld [vmem:[#allocation2 + $0x14] sm:$0xff]
        %v704 = vld [vmem:[#allocation2 + $0x24] sm:$0xff]
        %v705 = vld [vmem:[#allocation2 + $0x34] sm:$0xff]
        %706 = vst [vmem:[#allocation3 + $0x80] sm:$0xff] %v702
        %707 = vst [vmem:[#allocation3 + $0x88] sm:$0xff] %v703
        %708 = vst [vmem:[#allocation3 + $0x90] sm:$0xff] %v704
        %709 = vst [vmem:[#allocation3 + $0x98] sm:$0xff] %v705
        %v710 = vld [vmem:[#allocation2 + $0x4] sm:$0xff]
        %v711 = vld [vmem:[#allocation2 + $0xc] sm:$0xf]
        %v712 = vld [vmem:[#allocation2 + $0x14] sm:$0xff]
        %v713 = vld [vmem:[#allocation2 + $0x1c] sm:$0xf]
        %v714 = vld [vmem:[#allocation2 + $0x24] sm:$0xff]
        %v715 = vld [vmem:[#allocation2 + $0x2c] sm:$0xf]
        %v716 = vld [vmem:[#allocation2 + $0x34] sm:$0xff]
        %v717 = vld [vmem:[#allocation2 + $0x3c] sm:$0xf]
        %v718 = vunpack.c.l.bf16 %v710
        %v719 = vunpack.c.h.bf16 %v710
        %v720 = vunpack.c.l.bf16 %v711
        %v721 = vunpack.c.l.bf16 %v712
        %v722 = vunpack.c.h.bf16 %v712
        %v723 = vunpack.c.l.bf16 %v713
        %v724 = vunpack.c.l.bf16 %v714
        %v725 = vunpack.c.h.bf16 %v714
        %v726 = vunpack.c.l.bf16 %v715
        %v727 = vunpack.c.l.bf16 %v716
        %v728 = vunpack.c.h.bf16 %v716
        %v729 = vunpack.c.l.bf16 %v717
        %730 = vrot.lane.b32.xlu0 %v522, 1
        %v731 = vpop.permute.xlu0 %730
        %732 = vrot.lane.b32.xlu0 %v523, 1
        %v733 = vpop.permute.xlu0 %732
        %vm734 = vcmask 7168
        %v735 = vsel %vm734, %v731, %v733
        %v739 = vmul.f32 %v718, %v731
        %v740 = vmul.f32 %v719, %v735
        %v741 = vmul.f32 %v720, %v733
        %v742 = vmul.f32 %v721, %v731
        %v743 = vmul.f32 %v722, %v735
        %v744 = vmul.f32 %v723, %v733
        %v745 = vmul.f32 %v724, %v731
        %v746 = vmul.f32 %v725, %v735
        %v747 = vmul.f32 %v726, %v733
        %v748 = vmul.f32 %v727, %v731
        %v749 = vmul.f32 %v728, %v735
        %v750 = vmul.f32 %v729, %v733
        %v751 = vpack.c.bf16 %v740, %v739
        %v752 = vpack.c.bf16 %v741, %v741
        %v753 = vpack.c.bf16 %v743, %v742
        %v754 = vpack.c.bf16 %v744, %v744
        %v755 = vpack.c.bf16 %v746, %v745
        %v756 = vpack.c.bf16 %v747, %v747
        %v757 = vpack.c.bf16 %v749, %v748
        %v758 = vpack.c.bf16 %v750, %v750
        %767 = vrot.lane.b32.xlu0 %v751, 127
        %v768 = vpop.permute.xlu0 %767
        %769 = vrot.lane.b32.xlu0 %v752, 127
        %v770 = vpop.permute.xlu0 %769
        %771 = vrot.lane.b32.xlu0 %v753, 127
        %v772 = vpop.permute.xlu0 %771
        %773 = vrot.lane.b32.xlu0 %v754, 127
        %v774 = vpop.permute.xlu0 %773
        %775 = vrot.lane.b32.xlu0 %v755, 127
        %v776 = vpop.permute.xlu0 %775
        %777 = vrot.lane.b32.xlu0 %v756, 127
        %v778 = vpop.permute.xlu0 %777
        %779 = vrot.lane.b32.xlu0 %v757, 127
        %v780 = vpop.permute.xlu0 %779
        %781 = vrot.lane.b32.xlu0 %v758, 127
        %v782 = vpop.permute.xlu0 %781
        %v783 = vrot.slane %v768, 4
        %v784 = vrot.slane %v770, 4
        %v785 = vrot.slane %v772, 4
        %v786 = vrot.slane %v774, 4
        %v787 = vrot.slane %v776, 4
        %v788 = vrot.slane %v778, 4
        %v789 = vrot.slane %v780, 4
        %v790 = vrot.slane %v782, 4
        %v791 = vsel %vm427, %v783, %v784
        %vm792 = vcmask 1039360
        %v793 = vsel %vm792, %v768, %v791
        %v794 = vsel %vm427, %v785, %v786
        %v795 = vsel %vm792, %v772, %v794
        %v796 = vsel %vm427, %v787, %v788
        %v797 = vsel %vm792, %v776, %v796
        %v798 = vsel %vm427, %v789, %v790
        %v799 = vsel %vm792, %v780, %v798
        %804 = vst [vmem:[#allocation3 + $0xa0] sm:$0xff] %v793
        %805 = vst [vmem:[#allocation3 + $0xa8] sm:$0xff] %v795
        %806 = vst [vmem:[#allocation3 + $0xb0] sm:$0xff] %v797
        %807 = vst [vmem:[#allocation3 + $0xb8] sm:$0xff] %v799
        %v808 = vld [vmem:[#allocation2 + $0x4] sm:$0xff]
        %v809 = vld [vmem:[#allocation2 + $0xc] sm:$0xf]
        %v810 = vld [vmem:[#allocation2 + $0x14] sm:$0xff]
        %v811 = vld [vmem:[#allocation2 + $0x1c] sm:$0xf]
        %v812 = vld [vmem:[#allocation2 + $0x24] sm:$0xff]
        %v813 = vld [vmem:[#allocation2 + $0x2c] sm:$0xf]
        %v814 = vld [vmem:[#allocation2 + $0x34] sm:$0xff]
        %v815 = vld [vmem:[#allocation2 + $0x3c] sm:$0xf]
        %v816 = vunpack.c.l.bf16 %v808
        %v817 = vunpack.c.h.bf16 %v808
        %v818 = vunpack.c.l.bf16 %v809
        %v819 = vunpack.c.l.bf16 %v810
        %v820 = vunpack.c.h.bf16 %v810
        %v821 = vunpack.c.l.bf16 %v811
        %v822 = vunpack.c.l.bf16 %v812
        %v823 = vunpack.c.h.bf16 %v812
        %v824 = vunpack.c.l.bf16 %v813
        %v825 = vunpack.c.l.bf16 %v814
        %v826 = vunpack.c.h.bf16 %v814
        %v827 = vunpack.c.l.bf16 %v815
        %828 = vrot.lane.b32.xlu0 %v362, 15
        %v829 = vpop.permute.xlu0 %828
        %830 = vrot.lane.b32.xlu0 %v363, 15
        %v831 = vpop.permute.xlu0 %830
        %vm832 = vcmask 121856
        %v833 = vsel %vm832, %v829, %v831
        %v837 = vmul.f32 %v816, %v829
        %v838 = vmul.f32 %v817, %v833
        %v839 = vmul.f32 %v818, %v831
        %v840 = vmul.f32 %v819, %v829
        %v841 = vmul.f32 %v820, %v833
        %v842 = vmul.f32 %v821, %v831
        %v843 = vmul.f32 %v822, %v829
        %v844 = vmul.f32 %v823, %v833
        %v845 = vmul.f32 %v824, %v831
        %v846 = vmul.f32 %v825, %v829
        %v847 = vmul.f32 %v826, %v833
        %v848 = vmul.f32 %v827, %v831
        %v849 = vpack.c.bf16 %v838, %v837
        %v850 = vpack.c.bf16 %v839, %v839
        %v851 = vpack.c.bf16 %v841, %v840
        %v852 = vpack.c.bf16 %v842, %v842
        %v853 = vpack.c.bf16 %v844, %v843
        %v854 = vpack.c.bf16 %v845, %v845
        %v855 = vpack.c.bf16 %v847, %v846
        %v856 = vpack.c.bf16 %v848, %v848
        %865 = vrot.lane.b32.xlu0 %v849, 113
        %v866 = vpop.permute.xlu0 %865
        %867 = vrot.lane.b32.xlu0 %v850, 113
        %v868 = vpop.permute.xlu0 %867
        %869 = vrot.lane.b32.xlu0 %v851, 113
        %v870 = vpop.permute.xlu0 %869
        %871 = vrot.lane.b32.xlu0 %v852, 113
        %v872 = vpop.permute.xlu0 %871
        %873 = vrot.lane.b32.xlu0 %v853, 113
        %v874 = vpop.permute.xlu0 %873
        %875 = vrot.lane.b32.xlu0 %v854, 113
        %v876 = vpop.permute.xlu0 %875
        %877 = vrot.lane.b32.xlu0 %v855, 113
        %v878 = vpop.permute.xlu0 %877
        %879 = vrot.lane.b32.xlu0 %v856, 113
        %v880 = vpop.permute.xlu0 %879
        %v881 = vrot.slane %v866, 4
        %v882 = vrot.slane %v868, 4
        %v883 = vrot.slane %v870, 4
        %v884 = vrot.slane %v872, 4
        %v885 = vrot.slane %v874, 4
        %v886 = vrot.slane %v876, 4
        %v887 = vrot.slane %v878, 4
        %v888 = vrot.slane %v880, 4
        %v889 = vsel %vm427, %v881, %v882
        %vm890 = vcmask 924672
        %v891 = vsel %vm890, %v866, %v889
        %v892 = vsel %vm427, %v883, %v884
        %v893 = vsel %vm890, %v870, %v892
        %v894 = vsel %vm427, %v885, %v886
        %v895 = vsel %vm890, %v874, %v894
        %v896 = vsel %vm427, %v887, %v888
        %v897 = vsel %vm890, %v878, %v896
        %902 = vst [vmem:[#allocation3 + $0xc0] sm:$0xff] %v891
        %903 = vst [vmem:[#allocation3 + $0xc8] sm:$0xff] %v893
        %904 = vst [vmem:[#allocation3 + $0xd0] sm:$0xff] %v895
        %905 = vst [vmem:[#allocation3 + $0xd8] sm:$0xff] %v897
        %v906 = vld [vmem:[#allocation2 + $0x4] sm:$0xff]
        %v907 = vld [vmem:[#allocation2 + $0xc] sm:$0xf]
        %v908 = vld [vmem:[#allocation2 + $0x14] sm:$0xff]
        %v909 = vld [vmem:[#allocation2 + $0x1c] sm:$0xf]
        %v910 = vld [vmem:[#allocation2 + $0x24] sm:$0xff]
        %v911 = vld [vmem:[#allocation2 + $0x2c] sm:$0xf]
        %v912 = vld [vmem:[#allocation2 + $0x34] sm:$0xff]
        %v913 = vld [vmem:[#allocation2 + $0x3c] sm:$0xf]
        %922 = vrot.lane.b32.xlu0 %v906, 112
        %v923 = vpop.permute.xlu0 %922
        %924 = vrot.lane.b32.xlu0 %v907, 112
        %v925 = vpop.permute.xlu0 %924
        %926 = vrot.lane.b32.xlu0 %v908, 112
        %v927 = vpop.permute.xlu0 %926
        %928 = vrot.lane.b32.xlu0 %v909, 112
        %v929 = vpop.permute.xlu0 %928
        %930 = vrot.lane.b32.xlu0 %v910, 112
        %v931 = vpop.permute.xlu0 %930
        %932 = vrot.lane.b32.xlu0 %v911, 112
        %v933 = vpop.permute.xlu0 %932
        %934 = vrot.lane.b32.xlu0 %v912, 112
        %v935 = vpop.permute.xlu0 %934
        %936 = vrot.lane.b32.xlu0 %v913, 112
        %v937 = vpop.permute.xlu0 %936
        %v938 = vrot.slane %v923, 4
        %v939 = vrot.slane %v925, 4
        %v940 = vrot.slane %v927, 4
        %v941 = vrot.slane %v929, 4
        %v942 = vrot.slane %v931, 4
        %v943 = vrot.slane %v933, 4
        %v944 = vrot.slane %v935, 4
        %v945 = vrot.slane %v937, 4
        %v946 = vsel %vm427, %v938, %v939
        %vm947 = vcmask 916480
        %v948 = vsel %vm947, %v923, %v946
        %v949 = vsel %vm427, %v940, %v941
        %v950 = vsel %vm947, %v927, %v949
        %v951 = vsel %vm427, %v942, %v943
        %v952 = vsel %vm947, %v931, %v951
        %v953 = vsel %vm427, %v944, %v945
        %v954 = vsel %vm947, %v935, %v953
        %959 = vst [vmem:[#allocation3 + $0xe0] sm:$0xff] %v948
        %960 = vst [vmem:[#allocation3 + $0xe8] sm:$0xff] %v950
        %961 = vst [vmem:[#allocation3 + $0xf0] sm:$0xff] %v952
        %962 = vst [vmem:[#allocation3 + $0xf8] sm:$0xff] %v954
        %v963 = vld [vmem:[#allocation2 + $0x4] sm:$0xff]
        %v964 = vld [vmem:[#allocation2 + $0xc] sm:$0xf]
        %v965 = vld [vmem:[#allocation2 + $0x14] sm:$0xff]
        %v966 = vld [vmem:[#allocation2 + $0x1c] sm:$0xf]
        %v967 = vld [vmem:[#allocation2 + $0x24] sm:$0xff]
        %v968 = vld [vmem:[#allocation2 + $0x2c] sm:$0xf]
        %v969 = vld [vmem:[#allocation2 + $0x34] sm:$0xff]
        %v970 = vld [vmem:[#allocation2 + $0x3c] sm:$0xf]
        %v971 = vunpack.c.l.bf16 %v963
        %v972 = vunpack.c.h.bf16 %v963
        %v973 = vunpack.c.l.bf16 %v964
        %v974 = vunpack.c.l.bf16 %v965
        %v975 = vunpack.c.h.bf16 %v965
        %v976 = vunpack.c.l.bf16 %v966
        %v977 = vunpack.c.l.bf16 %v967
        %v978 = vunpack.c.h.bf16 %v967
        %v979 = vunpack.c.l.bf16 %v968
        %v980 = vunpack.c.l.bf16 %v969
        %v981 = vunpack.c.h.bf16 %v969
        %v982 = vunpack.c.l.bf16 %v970
        %983 = vrot.lane.b32.xlu0 %v522, 17
        %v984 = vpop.permute.xlu0 %983
        %985 = vrot.lane.b32.xlu0 %v523, 17
        %v986 = vpop.permute.xlu0 %985
        %vm987 = vcmask 138240
        %v988 = vsel %vm987, %v984, %v986
        %v992 = vmul.f32 %v971, %v984
        %v993 = vmul.f32 %v972, %v988
        %v994 = vmul.f32 %v973, %v986
        %v995 = vmul.f32 %v974, %v984
        %v996 = vmul.f32 %v975, %v988
        %v997 = vmul.f32 %v976, %v986
        %v998 = vmul.f32 %v977, %v984
        %v999 = vmul.f32 %v978, %v988
        %v1000 = vmul.f32 %v979, %v986
        %v1001 = vmul.f32 %v980, %v984
        %v1002 = vmul.f32 %v981, %v988
        %v1003 = vmul.f32 %v982, %v986
        %v1004 = vpack.c.bf16 %v993, %v992
        %v1005 = vpack.c.bf16 %v994, %v994
        %v1006 = vpack.c.bf16 %v996, %v995
        %v1007 = vpack.c.bf16 %v997, %v997
        %v1008 = vpack.c.bf16 %v999, %v998
        %v1009 = vpack.c.bf16 %v1000, %v1000
        %v1010 = vpack.c.bf16 %v1002, %v1001
        %v1011 = vpack.c.bf16 %v1003, %v1003
        %1020 = vrot.lane.b32.xlu0 %v1004, 111
        %v1021 = vpop.permute.xlu0 %1020
        %1022 = vrot.lane.b32.xlu0 %v1005, 111
        %v1023 = vpop.permute.xlu0 %1022
        %1024 = vrot.lane.b32.xlu0 %v1006, 111
        %v1025 = vpop.permute.xlu0 %1024
        %1026 = vrot.lane.b32.xlu0 %v1007, 111
        %v1027 = vpop.permute.xlu0 %1026
        %1028 = vrot.lane.b32.xlu0 %v1008, 111
        %v1029 = vpop.permute.xlu0 %1028
        %1030 = vrot.lane.b32.xlu0 %v1009, 111
        %v1031 = vpop.permute.xlu0 %1030
        %1032 = vrot.lane.b32.xlu0 %v1010, 111
        %v1033 = vpop.permute.xlu0 %1032
        %1034 = vrot.lane.b32.xlu0 %v1011, 111
        %v1035 = vpop.permute.xlu0 %1034
        %v1036 = vrot.slane %v1021, 4
        %v1037 = vrot.slane %v1023, 4
        %v1038 = vrot.slane %v1025, 4
        %v1039 = vrot.slane %v1027, 4
        %v1040 = vrot.slane %v1029, 4
        %v1041 = vrot.slane %v1031, 4
        %v1042 = vrot.slane %v1033, 4
        %v1043 = vrot.slane %v1035, 4
        %v1044 = vsel %vm427, %v1036, %v1037
        %vm1045 = vcmask 908288
        %v1046 = vsel %vm1045, %v1021, %v1044
        %v1047 = vsel %vm427, %v1038, %v1039
        %v1048 = vsel %vm1045, %v1025, %v1047
        %v1049 = vsel %vm427, %v1040, %v1041
        %v1050 = vsel %vm1045, %v1029, %v1049
        %v1051 = vsel %vm427, %v1042, %v1043
        %v1052 = vsel %vm1045, %v1033, %v1051
        %1057 = vst [vmem:[#allocation3 + $0x100] sm:$0xff] %v1046
        %1058 = vst [vmem:[#allocation3 + $0x108] sm:$0xff] %v1048
        %1059 = vst [vmem:[#allocation3 + $0x110] sm:$0xff] %v1050
        %1060 = vst [vmem:[#allocation3 + $0x118] sm:$0xff] %v1052
        %v1061 = vld [vmem:[%s2] sm:$0xff]
        %v1062 = vld [vmem:[%s2 + $0x8] sm:$0xf]
        %v1063 = vld [vmem:[%s2 + $0xc] sm:$0xff]
        %v1064 = vld [vmem:[%s2 + $0x14] sm:$0xf]
        %v1065 = vld [vmem:[%s2 + $0x18] sm:$0xff]
        %v1066 = vld [vmem:[%s2 + $0x20] sm:$0xf]
        %v1067 = vld [vmem:[%s2 + $0x24] sm:$0xff]
        %v1068 = vld [vmem:[%s2 + $0x2c] sm:$0xf]
        %v1069 = vld [vmem:[%s2 + $0x30] sm:$0xff]
        %v1070 = vld [vmem:[%s2 + $0x38] sm:$0xf]
        %v1071 = vld [vmem:[%s2 + $0x3c] sm:$0xff]
        %v1072 = vld [vmem:[%s2 + $0x44] sm:$0xf]
        %v1073 = vld [vmem:[%s2 + $0x48] sm:$0xff]
        %v1074 = vld [vmem:[%s2 + $0x50] sm:$0xf]
        %v1075 = vld [vmem:[%s2 + $0x54] sm:$0xff]
        %v1076 = vld [vmem:[%s2 + $0x5c] sm:$0xf]
        %v1077 = vld [vmem:[#allocation3] sm:$0xff]
        %v1078 = vld [vmem:[#allocation3 + $0x8] sm:$0xff]
        %v1079 = vld [vmem:[#allocation3 + $0x10] sm:$0xff]
        %v1080 = vld [vmem:[#allocation3 + $0x18] sm:$0xff]
        %v1081 = vld [vmem:[#allocation3 + $0x20] sm:$0xff]
        %v1082 = vld [vmem:[#allocation3 + $0x28] sm:$0xff]
        %v1083 = vld [vmem:[#allocation3 + $0x30] sm:$0xff]
        %v1084 = vld [vmem:[#allocation3 + $0x38] sm:$0xff]
        %v1085 = vld [vmem:[#allocation3 + $0x40] sm:$0xff]
        %v1086 = vld [vmem:[#allocation3 + $0x48] sm:$0xff]
        %v1087 = vld [vmem:[#allocation3 + $0x50] sm:$0xff]
        %v1088 = vld [vmem:[#allocation3 + $0x58] sm:$0xff]
        %v1089 = vld [vmem:[#allocation3 + $0x60] sm:$0xff]
        %v1090 = vld [vmem:[#allocation3 + $0x68] sm:$0xff]
        %v1091 = vld [vmem:[#allocation3 + $0x70] sm:$0xff]
        %v1092 = vld [vmem:[#allocation3 + $0x78] sm:$0xff]
        %v1093 = vld [vmem:[#allocation3 + $0x80] sm:$0xff]
        %v1094 = vld [vmem:[#allocation3 + $0x88] sm:$0xff]
        %v1095 = vld [vmem:[#allocation3 + $0x90] sm:$0xff]
        %v1096 = vld [vmem:[#allocation3 + $0x98] sm:$0xff]
        %v1097 = vld [vmem:[#allocation3 + $0xa0] sm:$0xff]
        %v1098 = vld [vmem:[#allocation3 + $0xa8] sm:$0xff]
        %v1099 = vld [vmem:[#allocation3 + $0xb0] sm:$0xff]
        %v1100 = vld [vmem:[#allocation3 + $0xb8] sm:$0xff]
        %v1101 = vld [vmem:[#allocation3 + $0xc0] sm:$0xff]
        %v1102 = vld [vmem:[#allocation3 + $0xc8] sm:$0xff]
        %v1103 = vld [vmem:[#allocation3 + $0xd0] sm:$0xff]
        %v1104 = vld [vmem:[#allocation3 + $0xd8] sm:$0xff]
        %v1105 = vld [vmem:[#allocation3 + $0xe0] sm:$0xff]
        %v1106 = vld [vmem:[#allocation3 + $0xe8] sm:$0xff]
        %v1107 = vld [vmem:[#allocation3 + $0xf0] sm:$0xff]
        %v1108 = vld [vmem:[#allocation3 + $0xf8] sm:$0xff]
        %v1109 = vld [vmem:[#allocation3 + $0x100] sm:$0xff]
        %v1110 = vld [vmem:[#allocation3 + $0x108] sm:$0xff]
        %v1111 = vld [vmem:[#allocation3 + $0x110] sm:$0xff]
        %v1112 = vld [vmem:[#allocation3 + $0x118] sm:$0xff]
        %v1113 = vld [vmem:[%s3] sm:$0xff]
        %v1114 = vld [vmem:[%s3 + $0x8] sm:$0xff]
        %v1115 = vld [vmem:[%s3 + $0x10] sm:$0xff]
        %v1116 = vld [vmem:[%s3 + $0x18] sm:$0xff]
        %v1117 = vld [vmem:[%s3 + $0x20] sm:$0xff]
        %v1118 = vld [vmem:[%s3 + $0x28] sm:$0xff]
        %v1119 = vld [vmem:[%s3 + $0x30] sm:$0xff]
        %v1120 = vld [vmem:[%s3 + $0x38] sm:$0xff]
        %1122 = vset.pattern.permute.xlu0 0
        %1123 = vperm.xlu0 %1122, %v1113
        %v1124 = vpop.permute.xlu0 %1123
        %1127 = vset.pattern.permute.xlu0 0
        %1128 = vperm.xlu0 %1127, %v1114
        %v1129 = vpop.permute.xlu0 %1128
        %1132 = vset.pattern.permute.xlu0 0
        %1133 = vperm.xlu0 %1132, %v1115
        %v1134 = vpop.permute.xlu0 %1133
        %1137 = vset.pattern.permute.xlu0 0
        %1138 = vperm.xlu0 %1137, %v1116
        %v1139 = vpop.permute.xlu0 %1138
        %1142 = vset.pattern.permute.xlu0 0
        %1143 = vperm.xlu0 %1142, %v1117
        %v1144 = vpop.permute.xlu0 %1143
        %1147 = vset.pattern.permute.xlu0 0
        %1148 = vperm.xlu0 %1147, %v1118
        %v1149 = vpop.permute.xlu0 %1148
        %1152 = vset.pattern.permute.xlu0 0
        %1153 = vperm.xlu0 %1152, %v1119
        %v1154 = vpop.permute.xlu0 %1153
        %1157 = vset.pattern.permute.xlu0 0
        %1158 = vperm.xlu0 %1157, %v1120
        %v1159 = vpop.permute.xlu0 %1158
        %v1177 = vunpack.c.l.b16 %v1061
        %v1178 = vunpack.c.h.b16 %v1061
        %v1179 = vunpack.c.l.b16 %v1062
        %v1180 = vunpack.c.l.b16 %v1063
        %v1181 = vunpack.c.h.b16 %v1063
        %v1182 = vunpack.c.l.b16 %v1064
        %v1183 = vunpack.c.l.b16 %v1065
        %v1184 = vunpack.c.h.b16 %v1065
        %v1185 = vunpack.c.l.b16 %v1066
        %v1186 = vunpack.c.l.b16 %v1067
        %v1187 = vunpack.c.h.b16 %v1067
        %v1188 = vunpack.c.l.b16 %v1068
        %v1189 = vunpack.c.l.b16 %v1069
        %v1190 = vunpack.c.h.b16 %v1069
        %v1191 = vunpack.c.l.b16 %v1070
        %v1192 = vunpack.c.l.b16 %v1071
        %v1193 = vunpack.c.h.b16 %v1071
        %v1194 = vunpack.c.l.b16 %v1072
        %v1195 = vunpack.c.l.b16 %v1073
        %v1196 = vunpack.c.h.b16 %v1073
        %v1197 = vunpack.c.l.b16 %v1074
        %v1198 = vunpack.c.l.b16 %v1075
        %v1199 = vunpack.c.h.b16 %v1075
        %v1200 = vunpack.c.l.b16 %v1076
        %v1201 = vpack.c.b16 %v1180, %v1177
        %v1202 = vpack.c.b16 %v1181, %v1178
        %v1203 = vpack.c.b16 %v1182, %v1179
        %v1204 = vpack.c.b16 %v1186, %v1183
        %v1205 = vpack.c.b16 %v1187, %v1184
        %v1206 = vpack.c.b16 %v1188, %v1185
        %v1207 = vpack.c.b16 %v1192, %v1189
        %v1208 = vpack.c.b16 %v1193, %v1190
        %v1209 = vpack.c.b16 %v1194, %v1191
        %v1210 = vpack.c.b16 %v1198, %v1195
        %v1211 = vpack.c.b16 %v1199, %v1196
        %v1212 = vpack.c.b16 %v1200, %v1197
        %v1257 = vunpack.c.l.b16 %v1077
        %v1258 = vunpack.c.h.b16 %v1077
        %v1259 = vunpack.c.l.b16 %v1078
        %v1260 = vunpack.c.h.b16 %v1078
        %v1261 = vunpack.c.l.b16 %v1079
        %v1262 = vunpack.c.h.b16 %v1079
        %v1263 = vunpack.c.l.b16 %v1080
        %v1264 = vunpack.c.h.b16 %v1080
        %v1265 = vunpack.c.l.b16 %v1081
        %v1266 = vunpack.c.h.b16 %v1081
        %v1267 = vunpack.c.l.b16 %v1082
        %v1268 = vunpack.c.h.b16 %v1082
        %v1269 = vunpack.c.l.b16 %v1083
        %v1270 = vunpack.c.h.b16 %v1083
        %v1271 = vunpack.c.l.b16 %v1084
        %v1272 = vunpack.c.h.b16 %v1084
        %v1273 = vunpack.c.l.b16 %v1085
        %v1274 = vunpack.c.h.b16 %v1085
        %v1275 = vunpack.c.l.b16 %v1086
        %v1276 = vunpack.c.h.b16 %v1086
        %v1277 = vunpack.c.l.b16 %v1087
        %v1278 = vunpack.c.h.b16 %v1087
        %v1279 = vunpack.c.l.b16 %v1088
        %v1280 = vunpack.c.h.b16 %v1088
        %v1281 = vunpack.c.l.b16 %v1089
        %v1282 = vunpack.c.h.b16 %v1089
        %v1283 = vunpack.c.l.b16 %v1090
        %v1284 = vunpack.c.h.b16 %v1090
        %v1285 = vunpack.c.l.b16 %v1091
        %v1286 = vunpack.c.h.b16 %v1091
        %v1287 = vunpack.c.l.b16 %v1092
        %v1288 = vunpack.c.h.b16 %v1092
        %v1289 = vunpack.c.l.b16 %v1093
        %v1290 = vunpack.c.h.b16 %v1093
        %v1291 = vunpack.c.l.b16 %v1094
        %v1292 = vunpack.c.h.b16 %v1094
        %v1293 = vunpack.c.l.b16 %v1095
        %v1294 = vunpack.c.h.b16 %v1095
        %v1295 = vunpack.c.l.b16 %v1096
        %v1296 = vunpack.c.h.b16 %v1096
        %v1297 = vunpack.c.l.b16 %v1097
        %v1298 = vunpack.c.h.b16 %v1097
        %v1299 = vunpack.c.l.b16 %v1098
        %v1300 = vunpack.c.h.b16 %v1098
        %v1301 = vunpack.c.l.b16 %v1099
        %v1302 = vunpack.c.h.b16 %v1099
        %v1303 = vunpack.c.l.b16 %v1100
        %v1304 = vunpack.c.h.b16 %v1100
        %v1305 = vunpack.c.l.b16 %v1101
        %v1306 = vunpack.c.h.b16 %v1101
        %v1307 = vunpack.c.l.b16 %v1102
        %v1308 = vunpack.c.h.b16 %v1102
        %v1309 = vunpack.c.l.b16 %v1103
        %v1310 = vunpack.c.h.b16 %v1103
        %v1311 = vunpack.c.l.b16 %v1104
        %v1312 = vunpack.c.h.b16 %v1104
        %v1313 = vunpack.c.l.b16 %v1105
        %v1314 = vunpack.c.h.b16 %v1105
        %v1315 = vunpack.c.l.b16 %v1106
        %v1316 = vunpack.c.h.b16 %v1106
        %v1317 = vunpack.c.l.b16 %v1107
        %v1318 = vunpack.c.h.b16 %v1107
        %v1319 = vunpack.c.l.b16 %v1108
        %v1320 = vunpack.c.h.b16 %v1108
        %v1321 = vunpack.c.l.b16 %v1109
        %v1322 = vunpack.c.h.b16 %v1109
        %v1323 = vunpack.c.l.b16 %v1110
        %v1324 = vunpack.c.h.b16 %v1110
        %v1325 = vunpack.c.l.b16 %v1111
        %v1326 = vunpack.c.h.b16 %v1111
        %v1327 = vunpack.c.l.b16 %v1112
        %v1328 = vunpack.c.h.b16 %v1112
        %v1329 = vpack.c.b16 %v1259, %v1257
        %v1330 = vpack.c.b16 %v1260, %v1258
        %v1331 = vpack.c.b16 %v1263, %v1261
        %v1332 = vpack.c.b16 %v1264, %v1262
        %v1333 = vpack.c.b16 %v1267, %v1265
        %v1334 = vpack.c.b16 %v1268, %v1266
        %v1335 = vpack.c.b16 %v1271, %v1269
        %v1336 = vpack.c.b16 %v1272, %v1270
        %v1337 = vpack.c.b16 %v1275, %v1273
        %v1338 = vpack.c.b16 %v1276, %v1274
        %v1339 = vpack.c.b16 %v1279, %v1277
        %v1340 = vpack.c.b16 %v1280, %v1278
        %v1341 = vpack.c.b16 %v1283, %v1281
        %v1342 = vpack.c.b16 %v1284, %v1282
        %v1343 = vpack.c.b16 %v1287, %v1285
        %v1344 = vpack.c.b16 %v1288, %v1286
        %v1345 = vpack.c.b16 %v1291, %v1289
        %v1346 = vpack.c.b16 %v1292, %v1290
        %v1347 = vpack.c.b16 %v1295, %v1293
        %v1348 = vpack.c.b16 %v1296, %v1294
        %v1349 = vpack.c.b16 %v1299, %v1297
        %v1350 = vpack.c.b16 %v1300, %v1298
        %v1351 = vpack.c.b16 %v1303, %v1301
        %v1352 = vpack.c.b16 %v1304, %v1302
        %v1353 = vpack.c.b16 %v1307, %v1305
        %v1354 = vpack.c.b16 %v1308, %v1306
        %v1355 = vpack.c.b16 %v1311, %v1309
        %v1356 = vpack.c.b16 %v1312, %v1310
        %v1357 = vpack.c.b16 %v1315, %v1313
        %v1358 = vpack.c.b16 %v1316, %v1314
        %v1359 = vpack.c.b16 %v1319, %v1317
        %v1360 = vpack.c.b16 %v1320, %v1318
        %v1361 = vpack.c.b16 %v1323, %v1321
        %v1362 = vpack.c.b16 %v1324, %v1322
        %v1363 = vpack.c.b16 %v1327, %v1325
        %v1364 = vpack.c.b16 %v1328, %v1326
        %vm1401 = vcmask 261120
        %v1403 = vsel %vm1401, %v1203, 0
        %v1406 = vsel %vm1401, %v1206, 0
        %v1409 = vsel %vm1401, %v1209, 0
        %v1412 = vsel %vm1401, %v1212, 0
        %1414 = vmatpush.bf16.msra.mxu0 %v1343
        %1415 = vmatpush.bf16.msra.mxu0 %v1341
        %1416 = vmatpush.bf16.msra.mxu0 %v1339
        %1417 = vmatpush.bf16.msra.mxu0 %v1337
        %1418 = vmatpush.bf16.msra.mxu0 %v1335
        %1419 = vmatpush.bf16.msra.mxu0 %v1333
        %1420 = vmatpush.bf16.msra.mxu0 %v1331
        %1421 = vmatpush.bf16.msra.mxu0 %v1329
        %1422 = vmatmul.bf16.gmra.mxu0 %v1201
        %v1423 = vpop.f32.mrf.mxu0
        %v1424 = vadd.f32 %v1124, %v1423
        %v1425 = vpop.f32.mrf.mxu0
        %v1426 = vadd.f32 %v1129, %v1425
        %1427 = vmatmul.bf16.gmra.mxu0 %v1204
        %v1428 = vpop.f32.mrf.mxu0
        %v1429 = vadd.f32 %v1134, %v1428
        %v1430 = vpop.f32.mrf.mxu0
        %v1431 = vadd.f32 %v1139, %v1430
        %1432 = vmatmul.bf16.gmra.mxu0 %v1207
        %v1433 = vpop.f32.mrf.mxu0
        %v1434 = vadd.f32 %v1144, %v1433
        %v1435 = vpop.f32.mrf.mxu0
        %v1436 = vadd.f32 %v1149, %v1435
        %1437 = vmatmul.bf16.gmra.mxu0 %v1210
        %v1438 = vpop.f32.mrf.mxu0
        %v1439 = vadd.f32 %v1154, %v1438
        %v1440 = vpop.f32.mrf.mxu0
        %v1441 = vadd.f32 %v1159, %v1440
        %1442 = vdwg.mxu0
        %1443 = vmatpush.bf16.msra.mxu0 %v1359
        %1444 = vmatpush.bf16.msra.mxu0 %v1357
        %1445 = vmatpush.bf16.msra.mxu0 %v1355
        %1446 = vmatpush.bf16.msra.mxu0 %v1353
        %1447 = vmatpush.bf16.msra.mxu0 %v1351
        %1448 = vmatpush.bf16.msra.mxu0 %v1349
        %1449 = vmatpush.bf16.msra.mxu0 %v1347
        %1450 = vmatpush.bf16.msra.mxu0 %v1345
        %1451 = vmatmul.bf16.gmra.mxu0 %v1202
        %v1452 = vpop.f32.mrf.mxu0
        %v1453 = vadd.f32 %v1424, %v1452
        %v1454 = vpop.f32.mrf.mxu0
        %v1455 = vadd.f32 %v1426, %v1454
        %1456 = vmatmul.bf16.gmra.mxu0 %v1205
        %v1457 = vpop.f32.mrf.mxu0
        %v1458 = vadd.f32 %v1429, %v1457
        %v1459 = vpop.f32.mrf.mxu0
        %v1460 = vadd.f32 %v1431, %v1459
        %1461 = vmatmul.bf16.gmra.mxu0 %v1208
        %v1462 = vpop.f32.mrf.mxu0
        %v1463 = vadd.f32 %v1434, %v1462
        %v1464 = vpop.f32.mrf.mxu0
        %v1465 = vadd.f32 %v1436, %v1464
        %1466 = vmatmul.bf16.gmra.mxu0 %v1211
        %v1467 = vpop.f32.mrf.mxu0
        %v1468 = vadd.f32 %v1439, %v1467
        %v1469 = vpop.f32.mrf.mxu0
        %v1470 = vadd.f32 %v1441, %v1469
        %1471 = vdwg.mxu0
        %1472 = vmatpush.bf16.msra.mxu0 0
        %1473 = vmatpush.bf16.msra.mxu0 0
        %1474 = vmatpush.bf16.msra.mxu0 0
        %1475 = vmatpush.bf16.msra.mxu0 0
        %1476 = vmatpush.bf16.msra.mxu0 0
        %1477 = vmatpush.bf16.msra.mxu0 0
        %1478 = vmatpush.bf16.msra.mxu0 %v1363
        %1479 = vmatpush.bf16.msra.mxu0 %v1361
        %1480 = vmatmul.bf16.gmra.mxu0 %v1403
        %v1481 = vpop.f32.mrf.mxu0
        %v1482 = vadd.f32 %v1453, %v1481
        %v1483 = vpop.f32.mrf.mxu0
        %v1484 = vadd.f32 %v1455, %v1483
        %1485 = vmatmul.bf16.gmra.mxu0 %v1406
        %v1486 = vpop.f32.mrf.mxu0
        %v1487 = vadd.f32 %v1458, %v1486
        %v1488 = vpop.f32.mrf.mxu0
        %v1489 = vadd.f32 %v1460, %v1488
        %1490 = vmatmul.bf16.gmra.mxu0 %v1409
        %v1491 = vpop.f32.mrf.mxu0
        %v1492 = vadd.f32 %v1463, %v1491
        %v1493 = vpop.f32.mrf.mxu0
        %v1494 = vadd.f32 %v1465, %v1493
        %1495 = vmatmul.bf16.gmra.mxu0 %v1412
        %v1496 = vpop.f32.mrf.mxu0
        %v1497 = vadd.f32 %v1468, %v1496
        %v1498 = vpop.f32.mrf.mxu0
        %v1499 = vadd.f32 %v1470, %v1498
        %1500 = vdwg.mxu0
        %1501 = vmatpush.bf16.msra.mxu0 %v1344
        %1502 = vmatpush.bf16.msra.mxu0 %v1342
        %1503 = vmatpush.bf16.msra.mxu0 %v1340
        %1504 = vmatpush.bf16.msra.mxu0 %v1338
        %1505 = vmatpush.bf16.msra.mxu0 %v1336
        %1506 = vmatpush.bf16.msra.mxu0 %v1334
        %1507 = vmatpush.bf16.msra.mxu0 %v1332
        %1508 = vmatpush.bf16.msra.mxu0 %v1330
        %1509 = vmatmul.bf16.gmra.mxu0 %v1201
        %v1510 = vpop.f32.mrf.mxu0
        %v1511 = vadd.f32 %v1124, %v1510
        %v1512 = vpop.f32.mrf.mxu0
        %v1513 = vadd.f32 %v1129, %v1512
        %1514 = vmatmul.bf16.gmra.mxu0 %v1204
        %v1515 = vpop.f32.mrf.mxu0
        %v1516 = vadd.f32 %v1134, %v1515
        %v1517 = vpop.f32.mrf.mxu0
        %v1518 = vadd.f32 %v1139, %v1517
        %1519 = vmatmul.bf16.gmra.mxu0 %v1207
        %v1520 = vpop.f32.mrf.mxu0
        %v1521 = vadd.f32 %v1144, %v1520
        %v1522 = vpop.f32.mrf.mxu0
        %v1523 = vadd.f32 %v1149, %v1522
        %1524 = vmatmul.bf16.gmra.mxu0 %v1210
        %v1525 = vpop.f32.mrf.mxu0
        %v1526 = vadd.f32 %v1154, %v1525
        %v1527 = vpop.f32.mrf.mxu0
        %v1528 = vadd.f32 %v1159, %v1527
        %1529 = vdwg.mxu0
        %1530 = vmatpush.bf16.msra.mxu0 %v1360
        %1531 = vmatpush.bf16.msra.mxu0 %v1358
        %1532 = vmatpush.bf16.msra.mxu0 %v1356
        %1533 = vmatpush.bf16.msra.mxu0 %v1354
        %1534 = vmatpush.bf16.msra.mxu0 %v1352
        %1535 = vmatpush.bf16.msra.mxu0 %v1350
        %1536 = vmatpush.bf16.msra.mxu0 %v1348
        %1537 = vmatpush.bf16.msra.mxu0 %v1346
        %1538 = vmatmul.bf16.gmra.mxu0 %v1202
        %v1539 = vpop.f32.mrf.mxu0
        %v1540 = vadd.f32 %v1511, %v1539
        %v1541 = vpop.f32.mrf.mxu0
        %v1542 = vadd.f32 %v1513, %v1541
        %1543 = vmatmul.bf16.gmra.mxu0 %v1205
        %v1544 = vpop.f32.mrf.mxu0
        %v1545 = vadd.f32 %v1516, %v1544
        %v1546 = vpop.f32.mrf.mxu0
        %v1547 = vadd.f32 %v1518, %v1546
        %1548 = vmatmul.bf16.gmra.mxu0 %v1208
        %v1549 = vpop.f32.mrf.mxu0
        %v1550 = vadd.f32 %v1521, %v1549
        %v1551 = vpop.f32.mrf.mxu0
        %v1552 = vadd.f32 %v1523, %v1551
        %1553 = vmatmul.bf16.gmra.mxu0 %v1211
        %v1554 = vpop.f32.mrf.mxu0
        %v1555 = vadd.f32 %v1526, %v1554
        %v1556 = vpop.f32.mrf.mxu0
        %v1557 = vadd.f32 %v1528, %v1556
        %1558 = vdwg.mxu0
        %1559 = vmatpush.bf16.msra.mxu0 0
        %1560 = vmatpush.bf16.msra.mxu0 0
        %1561 = vmatpush.bf16.msra.mxu0 0
        %1562 = vmatpush.bf16.msra.mxu0 0
        %1563 = vmatpush.bf16.msra.mxu0 0
        %1564 = vmatpush.bf16.msra.mxu0 0
        %1565 = vmatpush.bf16.msra.mxu0 %v1364
        %1566 = vmatpush.bf16.msra.mxu0 %v1362
        %1567 = vmatmul.bf16.gmra.mxu0 %v1403
        %v1568 = vpop.f32.mrf.mxu0
        %v1569 = vadd.f32 %v1540, %v1568
        %v1570 = vpop.f32.mrf.mxu0
        %v1571 = vadd.f32 %v1542, %v1570
        %1572 = vmatmul.bf16.gmra.mxu0 %v1406
        %v1573 = vpop.f32.mrf.mxu0
        %v1574 = vadd.f32 %v1545, %v1573
        %v1575 = vpop.f32.mrf.mxu0
        %v1576 = vadd.f32 %v1547, %v1575
        %1577 = vmatmul.bf16.gmra.mxu0 %v1409
        %v1578 = vpop.f32.mrf.mxu0
        %v1579 = vadd.f32 %v1550, %v1578
        %v1580 = vpop.f32.mrf.mxu0
        %v1581 = vadd.f32 %v1552, %v1580
        %1582 = vmatmul.bf16.gmra.mxu0 %v1412
        %v1583 = vpop.f32.mrf.mxu0
        %v1584 = vadd.f32 %v1555, %v1583
        %v1585 = vpop.f32.mrf.mxu0
        %v1586 = vadd.f32 %v1557, %v1585
        %1587 = vdwg.mxu0
        %v1588 = vadd.f32 %v1482, %v1569
        %1589 = vadd.xlane.f32.xlu0 %v1588
        %v1590 = vpop.xlane.xlu0 %1589
        %v1591 = vadd.f32 %v1484, %v1571
        %1592 = vadd.xlane.f32.xlu0 %v1591
        %v1593 = vpop.xlane.xlu0 %1592
        %v1594 = vadd.f32 %v1487, %v1574
        %1595 = vadd.xlane.f32.xlu0 %v1594
        %v1596 = vpop.xlane.xlu0 %1595
        %v1597 = vadd.f32 %v1489, %v1576
        %1598 = vadd.xlane.f32.xlu0 %v1597
        %v1599 = vpop.xlane.xlu0 %1598
        %v1600 = vadd.f32 %v1492, %v1579
        %1601 = vadd.xlane.f32.xlu0 %v1600
        %v1602 = vpop.xlane.xlu0 %1601
        %v1603 = vadd.f32 %v1494, %v1581
        %1604 = vadd.xlane.f32.xlu0 %v1603
        %v1605 = vpop.xlane.xlu0 %1604
        %v1606 = vadd.f32 %v1497, %v1584
        %1607 = vadd.xlane.f32.xlu0 %v1606
        %v1608 = vpop.xlane.xlu0 %1607
        %v1609 = vadd.f32 %v1499, %v1586
        %1610 = vadd.xlane.f32.xlu0 %v1609
        %v1611 = vpop.xlane.xlu0 %1610
        %v1612 = vrcp.pop 256.0
        %v1613 = vmul.f32 256.0, %v1612
        %v1614 = vsub.f32 1.0, %v1613
        %v1615 = vmul.f32 %v1612, %v1614
        %v1616 = vadd.f32 %v1612, %v1615
        %vm1617 = vweird.f32 %v1612
        %v1618 = vsel %vm1617, %v1612, %v1616
        %v1619 = vmul.f32 %v1590, %v1618
        %v1620 = vmul.f32 %v1593, %v1618
        %v1621 = vmul.f32 %v1596, %v1618
        %v1622 = vmul.f32 %v1599, %v1618
        %v1623 = vmul.f32 %v1602, %v1618
        %v1624 = vmul.f32 %v1605, %v1618
        %v1625 = vmul.f32 %v1608, %v1618
        %v1626 = vmul.f32 %v1611, %v1618
        %v1627 = vld [vmem:[%s4] sm:$0xff]
        %v1628 = vld [vmem:[%s4 + $0x8] sm:$0xff]
        %v1629 = vld [vmem:[%s4 + $0x10] sm:$0xff]
        %v1630 = vld [vmem:[%s4 + $0x18] sm:$0xff]
        %v1631 = vld [vmem:[%s4 + $0x20] sm:$0xff]
        %v1632 = vld [vmem:[%s4 + $0x28] sm:$0xff]
        %v1633 = vld [vmem:[%s4 + $0x30] sm:$0xff]
        %v1634 = vld [vmem:[%s4 + $0x38] sm:$0xff]
        %v1635 = vmul.f32 %v1627, %v1619
        %v1636 = vmul.f32 %v1628, %v1620
        %v1637 = vmul.f32 %v1629, %v1621
        %v1638 = vmul.f32 %v1630, %v1622
        %v1639 = vmul.f32 %v1631, %v1623
        %v1640 = vmul.f32 %v1632, %v1624
        %v1641 = vmul.f32 %v1633, %v1625
        %v1642 = vmul.f32 %v1634, %v1626
        %vm1643 = vcmask 31744
        %v1644 = vsel %vm1643, %v1635, 0.0
        %v1645 = vsel %vm1643, %v1636, 0.0
        %v1646 = vadd.f32 %v1644, %v1645
        %v1647 = vsel %vm1643, %v1637, 0.0
        %v1648 = vadd.f32 %v1646, %v1647
        %v1649 = vsel %vm1643, %v1638, 0.0
        %v1650 = vadd.f32 %v1648, %v1649
        %v1651 = vsel %vm1643, %v1639, 0.0
        %v1652 = vadd.f32 %v1650, %v1651
        %v1653 = vsel %vm1643, %v1640, 0.0
        %v1654 = vadd.f32 %v1652, %v1653
        %v1655 = vsel %vm1643, %v1641, 0.0
        %v1656 = vadd.f32 %v1654, %v1655
        %v1657 = vsel %vm1643, %v1642, 0.0
        %v1658 = vadd.f32 %v1656, %v1657
        %v1659 = vrot.slane %v1658, 4
        %v1660 = vadd.f32 %v1658, %v1659
        %v1661 = vrot.slane %v1660, 2
        %v1662 = vadd.f32 %v1660, %v1661
        %v1663 = vrot.slane %v1662, 1
        %v1664 = vadd.f32 %v1662, %v1663
        %v1665 = vmax.f32 %v1664, 0.0
        %v1666 = vld [vmem:[%s5] sm:$0xff]
        %v1667 = vld [vmem:[%s5 + $0x8] sm:$0xff]
        %v1668 = vld [vmem:[%s5 + $0x10] sm:$0xff]
        %v1669 = vld [vmem:[%s5 + $0x18] sm:$0xff]
        %v1670 = vld [vmem:[%s5 + $0x20] sm:$0xff]
        %v1671 = vld [vmem:[%s5 + $0x28] sm:$0xff]
        %v1672 = vld [vmem:[%s5 + $0x30] sm:$0xff]
        %v1673 = vld [vmem:[%s5 + $0x38] sm:$0xff]
        %v1674 = vmul.f32 %v1666, %v1665
        %v1675 = vmul.f32 %v1667, %v1665
        %v1676 = vmul.f32 %v1668, %v1665
        %v1677 = vmul.f32 %v1669, %v1665
        %v1678 = vmul.f32 %v1670, %v1665
        %v1679 = vmul.f32 %v1671, %v1665
        %v1680 = vmul.f32 %v1672, %v1665
        %v1681 = vmul.f32 %v1673, %v1665
        %v1682 = vsel %vm1643, %v1674, 0.0
        %1683 = vadd.xlane.f32.xlu0 %v1682
        %v1684 = vpop.xlane.xlu0 %1683
        %v1685 = vsel %vm1643, %v1675, 0.0
        %1686 = vadd.xlane.f32.xlu0 %v1685
        %v1687 = vpop.xlane.xlu0 %1686
        %v1688 = vsel %vm1643, %v1676, 0.0
        %1689 = vadd.xlane.f32.xlu0 %v1688
        %v1690 = vpop.xlane.xlu0 %1689
        %v1691 = vsel %vm1643, %v1677, 0.0
        %1692 = vadd.xlane.f32.xlu0 %v1691
        %v1693 = vpop.xlane.xlu0 %1692
        %v1694 = vsel %vm1643, %v1678, 0.0
        %1695 = vadd.xlane.f32.xlu0 %v1694
        %v1696 = vpop.xlane.xlu0 %1695
        %v1697 = vsel %vm1643, %v1679, 0.0
        %1698 = vadd.xlane.f32.xlu0 %v1697
        %v1699 = vpop.xlane.xlu0 %1698
        %v1700 = vsel %vm1643, %v1680, 0.0
        %1701 = vadd.xlane.f32.xlu0 %v1700
        %v1702 = vpop.xlane.xlu0 %1701
        %v1703 = vsel %vm1643, %v1681, 0.0
        %1704 = vadd.xlane.f32.xlu0 %v1703
        %v1705 = vpop.xlane.xlu0 %1704
        %v1706 = vxor.u32 %v1684, 2147483648
        %v1707 = vxor.u32 %v1687, 2147483648
        %v1708 = vxor.u32 %v1690, 2147483648
        %v1709 = vxor.u32 %v1693, 2147483648
        %v1710 = vxor.u32 %v1696, 2147483648
        %v1711 = vxor.u32 %v1699, 2147483648
        %v1712 = vxor.u32 %v1702, 2147483648
        %v1713 = vxor.u32 %v1705, 2147483648
        %v1714 = vmul.f32 %v1706, 1.442695
        %v1715 = vpow.pop %v1714
        %v1716 = vmul.f32 %v1707, 1.442695
        %v1717 = vpow.pop %v1716
        %v1718 = vmul.f32 %v1708, 1.442695
        %v1719 = vpow.pop %v1718
        %v1720 = vmul.f32 %v1709, 1.442695
        %v1721 = vpow.pop %v1720
        %v1722 = vmul.f32 %v1710, 1.442695
        %v1723 = vpow.pop %v1722
        %v1724 = vmul.f32 %v1711, 1.442695
        %v1725 = vpow.pop %v1724
        %v1726 = vmul.f32 %v1712, 1.442695
        %v1727 = vpow.pop %v1726
        %v1728 = vmul.f32 %v1713, 1.442695
        %v1729 = vpow.pop %v1728
        %v1730 = vadd.f32 %v1715, 1.0
        %v1731 = vadd.f32 %v1717, 1.0
        %v1732 = vadd.f32 %v1719, 1.0
        %v1733 = vadd.f32 %v1721, 1.0
        %v1734 = vadd.f32 %v1723, 1.0
        %v1735 = vadd.f32 %v1725, 1.0
        %v1736 = vadd.f32 %v1727, 1.0
        %v1737 = vadd.f32 %v1729, 1.0
        %v1738 = vrcp.pop %v1730
        %v1739 = vmul.f32 %v1730, %v1738
        %v1740 = vsub.f32 1.0, %v1739
        %v1741 = vmul.f32 %v1738, %v1740
        %v1742 = vadd.f32 %v1738, %v1741
        %vm1743 = vweird.f32 %v1730
        %vm1744 = vweird.f32 %v1738
        %vm1745 = vmor %vm1743, %vm1744
        %v1746 = vsel %vm1745, %v1738, %v1742
        %v1747 = vand.u32 2147483647, %v1730
        %vm1748 = vcmp.eq.f32.partialorder %v1747, 8.507059e+37
        %v1749 = vand.u32 %v1730, 2147483648
        %v1750 = vor.u32 1.1754944e-38, %v1749
        %v1751 = vsel %vm1748, %v1750, %v1746
        %v1752 = vmul.f32 1.0, %v1751
        %v1753 = vrcp.pop %v1731
        %v1754 = vmul.f32 %v1731, %v1753
        %v1755 = vsub.f32 1.0, %v1754
        %v1756 = vmul.f32 %v1753, %v1755
        %v1757 = vadd.f32 %v1753, %v1756
        %vm1758 = vweird.f32 %v1731
        %vm1759 = vweird.f32 %v1753
        %vm1760 = vmor %vm1758, %vm1759
        %v1761 = vsel %vm1760, %v1753, %v1757
        %v1762 = vand.u32 2147483647, %v1731
        %vm1763 = vcmp.eq.f32.partialorder %v1762, 8.507059e+37
        %v1764 = vand.u32 %v1731, 2147483648
        %v1765 = vor.u32 1.1754944e-38, %v1764
        %v1766 = vsel %vm1763, %v1765, %v1761
        %v1767 = vmul.f32 1.0, %v1766
        %v1768 = vrcp.pop %v1732
        %v1769 = vmul.f32 %v1732, %v1768
        %v1770 = vsub.f32 1.0, %v1769
        %v1771 = vmul.f32 %v1768, %v1770
        %v1772 = vadd.f32 %v1768, %v1771
        %vm1773 = vweird.f32 %v1732
        %vm1774 = vweird.f32 %v1768
        %vm1775 = vmor %vm1773, %vm1774
        %v1776 = vsel %vm1775, %v1768, %v1772
        %v1777 = vand.u32 2147483647, %v1732
        %vm1778 = vcmp.eq.f32.partialorder %v1777, 8.507059e+37
        %v1779 = vand.u32 %v1732, 2147483648
        %v1780 = vor.u32 1.1754944e-38, %v1779
        %v1781 = vsel %vm1778, %v1780, %v1776
        %v1782 = vmul.f32 1.0, %v1781
        %v1783 = vrcp.pop %v1733
        %v1784 = vmul.f32 %v1733, %v1783
        %v1785 = vsub.f32 1.0, %v1784
        %v1786 = vmul.f32 %v1783, %v1785
        %v1787 = vadd.f32 %v1783, %v1786
        %vm1788 = vweird.f32 %v1733
        %vm1789 = vweird.f32 %v1783
        %vm1790 = vmor %vm1788, %vm1789
        %v1791 = vsel %vm1790, %v1783, %v1787
        %v1792 = vand.u32 2147483647, %v1733
        %vm1793 = vcmp.eq.f32.partialorder %v1792, 8.507059e+37
        %v1794 = vand.u32 %v1733, 2147483648
        %v1795 = vor.u32 1.1754944e-38, %v1794
        %v1796 = vsel %vm1793, %v1795, %v1791
        %v1797 = vmul.f32 1.0, %v1796
        %v1798 = vrcp.pop %v1734
        %v1799 = vmul.f32 %v1734, %v1798
        %v1800 = vsub.f32 1.0, %v1799
        %v1801 = vmul.f32 %v1798, %v1800
        %v1802 = vadd.f32 %v1798, %v1801
        %vm1803 = vweird.f32 %v1734
        %vm1804 = vweird.f32 %v1798
        %vm1805 = vmor %vm1803, %vm1804
        %v1806 = vsel %vm1805, %v1798, %v1802
        %v1807 = vand.u32 2147483647, %v1734
        %vm1808 = vcmp.eq.f32.partialorder %v1807, 8.507059e+37
        %v1809 = vand.u32 %v1734, 2147483648
        %v1810 = vor.u32 1.1754944e-38, %v1809
        %v1811 = vsel %vm1808, %v1810, %v1806
        %v1812 = vmul.f32 1.0, %v1811
        %v1813 = vrcp.pop %v1735
        %v1814 = vmul.f32 %v1735, %v1813
        %v1815 = vsub.f32 1.0, %v1814
        %v1816 = vmul.f32 %v1813, %v1815
        %v1817 = vadd.f32 %v1813, %v1816
        %vm1818 = vweird.f32 %v1735
        %vm1819 = vweird.f32 %v1813
        %vm1820 = vmor %vm1818, %vm1819
        %v1821 = vsel %vm1820, %v1813, %v1817
        %v1822 = vand.u32 2147483647, %v1735
        %vm1823 = vcmp.eq.f32.partialorder %v1822, 8.507059e+37
        %v1824 = vand.u32 %v1735, 2147483648
        %v1825 = vor.u32 1.1754944e-38, %v1824
        %v1826 = vsel %vm1823, %v1825, %v1821
        %v1827 = vmul.f32 1.0, %v1826
        %v1828 = vrcp.pop %v1736
        %v1829 = vmul.f32 %v1736, %v1828
        %v1830 = vsub.f32 1.0, %v1829
        %v1831 = vmul.f32 %v1828, %v1830
        %v1832 = vadd.f32 %v1828, %v1831
        %vm1833 = vweird.f32 %v1736
        %vm1834 = vweird.f32 %v1828
        %vm1835 = vmor %vm1833, %vm1834
        %v1836 = vsel %vm1835, %v1828, %v1832
        %v1837 = vand.u32 2147483647, %v1736
        %vm1838 = vcmp.eq.f32.partialorder %v1837, 8.507059e+37
        %v1839 = vand.u32 %v1736, 2147483648
        %v1840 = vor.u32 1.1754944e-38, %v1839
        %v1841 = vsel %vm1838, %v1840, %v1836
        %v1842 = vmul.f32 1.0, %v1841
        %v1843 = vrcp.pop %v1737
        %v1844 = vmul.f32 %v1737, %v1843
        %v1845 = vsub.f32 1.0, %v1844
        %v1846 = vmul.f32 %v1843, %v1845
        %v1847 = vadd.f32 %v1843, %v1846
        %vm1848 = vweird.f32 %v1737
        %vm1849 = vweird.f32 %v1843
        %vm1850 = vmor %vm1848, %vm1849
        %v1851 = vsel %vm1850, %v1843, %v1847
        %v1852 = vand.u32 2147483647, %v1737
        %vm1853 = vcmp.eq.f32.partialorder %v1852, 8.507059e+37
        %v1854 = vand.u32 %v1737, 2147483648
        %v1855 = vor.u32 1.1754944e-38, %v1854
        %v1856 = vsel %vm1853, %v1855, %v1851
        %v1857 = vmul.f32 1.0, %v1856
        %s1858 = sld [smem:[#allocation4]]
        %s1859 = sld [smem:[#allocation4 + $0x1]]
        %s1860 = sld [smem:[#allocation4 + $0x2]]
        %v1861 = vstv %s1858
        %v1862 = vmul.f32 %v1861, %v1752
        %v1863 = vmul.f32 %v1861, %v1767
        %v1864 = vmul.f32 %v1861, %v1782
        %v1865 = vmul.f32 %v1861, %v1797
        %v1866 = vmul.f32 %v1482, %v1862
        %v1867 = vmul.f32 %v1569, %v1862
        %v1868 = vmul.f32 %v1484, %v1863
        %v1869 = vmul.f32 %v1571, %v1863
        %v1870 = vmul.f32 %v1487, %v1864
        %v1871 = vmul.f32 %v1574, %v1864
        %v1872 = vmul.f32 %v1489, %v1865
        %v1873 = vmul.f32 %v1576, %v1865
        %v1874 = vstv %s1859
        %v1875 = vmul.f32 %v1874, %v1812
        %v1876 = vmul.f32 %v1874, %v1827
        %v1877 = vmul.f32 %v1874, %v1842
        %v1878 = vmul.f32 %v1874, %v1857
        %v1879 = vmul.f32 %v1492, %v1875
        %v1880 = vmul.f32 %v1579, %v1875
        %v1881 = vmul.f32 %v1494, %v1876
        %v1882 = vmul.f32 %v1581, %v1876
        %v1883 = vmul.f32 %v1497, %v1877
        %v1884 = vmul.f32 %v1584, %v1877
        %v1885 = vmul.f32 %v1499, %v1878
        %v1886 = vmul.f32 %v1586, %v1878
        %v1887 = vadd.f32 %v1866, %v1879
        %v1888 = vadd.f32 %v1867, %v1880
        %v1889 = vadd.f32 %v1868, %v1881
        %v1890 = vadd.f32 %v1869, %v1882
        %v1891 = vadd.f32 %v1870, %v1883
        %v1892 = vadd.f32 %v1871, %v1884
        %v1893 = vadd.f32 %v1872, %v1885
        %v1894 = vadd.f32 %v1873, %v1886
        %v1895 = vld [vmem:[%s287] sm:$0xff]
        %v1896 = vld [vmem:[%s287 + $0x8] sm:$0xff]
        %v1897 = vld [vmem:[%s287 + $0x10] sm:$0xff]
        %v1898 = vld [vmem:[%s287 + $0x18] sm:$0xff]
        %v1899 = vld [vmem:[%s287 + $0x20] sm:$0xff]
        %v1900 = vld [vmem:[%s287 + $0x28] sm:$0xff]
        %v1901 = vld [vmem:[%s287 + $0x30] sm:$0xff]
        %v1902 = vld [vmem:[%s287 + $0x38] sm:$0xff]
        %v1903 = vstv %s1860
        %v1904 = vmul.f32 %v1903, %v1895
        %v1905 = vmul.f32 %v1903, %v1896
        %v1906 = vmul.f32 %v1903, %v1897
        %v1907 = vmul.f32 %v1903, %v1898
        %v1908 = vmul.f32 %v1903, %v1899
        %v1909 = vmul.f32 %v1903, %v1900
        %v1910 = vmul.f32 %v1903, %v1901
        %v1911 = vmul.f32 %v1903, %v1902
        %v1912 = vadd.f32 %v1887, %v1904
        %v1913 = vadd.f32 %v1888, %v1905
        %v1914 = vadd.f32 %v1889, %v1906
        %v1915 = vadd.f32 %v1890, %v1907
        %v1916 = vadd.f32 %v1891, %v1908
        %v1917 = vadd.f32 %v1892, %v1909
        %v1918 = vadd.f32 %v1893, %v1910
        %v1919 = vadd.f32 %v1894, %v1911
        %1920 = vst [vmem:[%s292] sm:$0xff] %v1912
        %1921 = vst [vmem:[%s292 + $0x8] sm:$0xff] %v1913
        %1922 = vst [vmem:[%s292 + $0x10] sm:$0xff] %v1914
        %1923 = vst [vmem:[%s292 + $0x18] sm:$0xff] %v1915
        %1924 = vst [vmem:[%s292 + $0x20] sm:$0xff] %v1916
        %1925 = vst [vmem:[%s292 + $0x28] sm:$0xff] %v1917
        %1926 = vst [vmem:[%s292 + $0x30] sm:$0xff] %v1918
        %1927 = vst [vmem:[%s292 + $0x38] sm:$0xff] %v1919
        %p1928 = scmp.lt.s32.totalorder %s19, 1
        %s1929 = scalar_select %p1928, %s19, 1
        %s1930 = smul.addr %s1929, 8
        %s1931 = smul.addr %s1930, 8
        %s1932 = scalar_lea.vmem %s7, %s1931
        // Predicated region
        $region53: #{multi_conv_block.1} parent=47 // pred_check
          %p1933 = pneg %p189
        $region54: #{multi_conv_block.1} parent=47 // pred_check_branch
          %1935 = sbr.rel (%p1933) target = $region56
        $region55: #{multi_conv_block.1} parent=47 // pred_region
          _
        $region56: #{multi_conv_block.1} parent=47 // pred_fallthru
          _
      $region48: #{multi_conv_block.1} parent=5 // pred_fallthru
        _
      %p1936 = scmp.le.s32.totalorder 2, %s14
      // Predicated region
      $region57: #{multi_conv_block.1} parent=5 // pred_check
        %p1937 = pneg %p1936
      $region58: #{multi_conv_block.1} parent=5 // pred_check_branch
        %1939 = sbr.rel (%p1937) target = $region60
      $region59: #{multi_conv_block.1} parent=5 // pred_region
        %s1940 = ssub.s32 %s14, 2
        // Predicated region
        $region61: #{multi_conv_block.1} parent=59 // pred_check
          %p1941 = pneg %p195
        $region62: #{multi_conv_block.1} parent=59 // pred_check_branch
          %1943 = sbr.rel (%p1941) target = $region64
        $region63: #{multi_conv_block.1} parent=59 // pred_region
          %p1944 = scmp.lt.s32.totalorder %s20, 1
          %s1945 = scalar_select %p1944, %s20, 1
          %s1946 = smul.addr %s1945, 8
          %s1947 = smul.addr %s1946, 8
          %s1948 = scalar_lea.vmem %s7, %s1947
        $region64: #{multi_conv_block.1} parent=59 // pred_fallthru
          _
      $region60: #{multi_conv_block.1} parent=5 // pred_fallthru
        _
    $region6: #{multi_conv_block.1} parent=1 // loop_footer
      %s18 = sadd.s32 1, %s14
    $region7: #{multi_conv_block.1} parent=1 // loop_footer_branch
      %13 = sbr.rel target = $region3
    $region8: #{multi_conv_block.1} parent=1 // loop_exit
      _
    %1949 = vsyncpa [#allocation5], 1
    %s1950 = scalar_lea.sflag [#allocation5], 1
    %1951 = vsyncpa %s1950, 1

</llo_original>
